<compile_context>
chip_gen: v7x
topology: tpu7x:2x2x1
jax: 0.10.0
libtpu: 0.0.40
codegen_flags: <defaults>
</compile_context>

<pallas_src>
import math
import functools

import jax
import jax.numpy as jnp
from jax.experimental import pallas as pl
from jax.experimental.pallas import tpu as pltpu

D_K = 128  # fixed in the PyTorch module


def _round_up(x, m):
    return (x + m - 1) // m * m


def _pad_to(x, shape):
    pads = [(0, t - s) for s, t in zip(x.shape, shape)]
    if any(p != (0, 0) for p in pads):
        x = jnp.pad(x, pads)
    return x


def _vmem_capacity_bytes():
    """Physical VMEM per core; falls back to the v7x floor (64 MiB) if unknown."""
    try:
        info = pltpu.get_tpu_info()
        for name in ("vmem_capacity_bytes", "vmem_bytes", "vmem_size_bytes"):
            v = getattr(info, name, None)
            if v:
                return int(v)
    except Exception:
        pass
    return 64 * 1024 * 1024


def att_reduce_kernel(q_ref, kt_ref, wq_ref, bq_ref, wk_ref, bk_ref,
                      wr_ref, br_ref, o_ref, qp_ref, kp_ref, *, rq):
    # q_ref : (bb, TQ, n_in)     compute dtype (bf16 or f32)
    # kt_ref: (bb, n_in, TK)     key pre-transposed -> per-head RHS is (d_k, TK)
    # wq_ref: (n_in, proj)       bq_ref: (1, proj)   f32 bias
    # wk_ref: (proj, n_in)       bk_ref: (proj, 1)   f32 bias
    # wr_ref: (n_out, n_out) SMEM (1/sqrt(d_k) pre-folded), br_ref: (n_out,) SMEM
    # o_ref : (bb, n_out, TQ, TK)
    # qp_ref: (bb*TQ, proj) VMEM scratch, persists across the ki grid axis
    # kp_ref: (proj, TK)    VMEM scratch, recomputed per (b, qi, ki) step
    bb, n_out, tq, tk = o_ref.shape
    n_in = q_ref.shape[-1]
    cdt = qp_ref.dtype

    # NOTE: this cache is only correct because the ki grid axis (axis 2) is the
    # innermost axis and marked "arbitrary" (sequential per core). Do not reorder the
    # grid or mark ki "parallel" without removing the cache.
    @pl.when(pl.program_id(2) == 0)
    def _():
        if bb == 1:
            q2 = q_ref[0]                                  # (TQ, n_in)
        else:
            # One tall MXU matmul for all bb batches (amortizes fill/drain).
            q2 = q_ref[...].reshape(bb * tq, n_in)
        qp = jnp.dot(q2, wq_ref[...], preferred_element_type=jnp.float32) + bq_ref[...]
        qp_ref[...] = qp.astype(cdt)

    n_rb = tq // rq
    for b in range(bb):
        # K projection for this (b, ki) tile, already transposed: (proj, TK).
        # TODO(synk): this is recomputed for every qi tile (factor Lq/TQ); negligible
        # for small n_in, but for n_in ~ TQ swap the cached projection (cache K,
        # recompute Q) or hoist both projections into a preceding pass.
        kp = (jnp.dot(wk_ref[...], kt_ref[b], preferred_element_type=jnp.float32)
              + bk_ref[...])
        kp_ref[...] = kp.astype(cdt)

        # Row-sub-blocked head reduce: the n_out f32 accumulators plus one s_h tile
        # of shape (rq, TK) stay register-resident (no spill / vst traffic).
        for r in range(n_rb):
            row0 = b * tq + r * rq
            acc = [None] * n_out
            for h in range(n_out):
                qs = qp_ref[pl.ds(row0, rq), pl.ds(h * D_K, D_K)]        # (rq, d_k)
                s_h = jnp.dot(qs, kp_ref[pl.ds(h * D_K, D_K), :],
                              preferred_element_type=jnp.float32)        # (rq, TK) f32
                for o in range(n_out):
                    if h == 0:
                        # Fold the output bias into the first-head accumulation.
                        acc[o] = wr_ref[o, 0] * s_h + br_ref[o]
                    else:
                        acc[o] = acc[o] + wr_ref[o, h] * s_h
            for o in range(n_out):
                o_ref[b, o, pl.ds(r * rq, rq), :] = acc[o].astype(o_ref.dtype)


def att_reduce(query, key, wq_t, bq, wk, bk, wr, br, *,
               compute_dtype=jnp.bfloat16, out_dtype=jnp.float32,
               head_axis_last=True, tq_max=None, tk_max=None, bb_max=4):
    """query/key: (B, L, n_in) f32.
    wq_t: (n_in, n_out*128)  [Linear0 weight, transposed],  bq: (n_out*128,)
    wk  : (n_out*128, n_in)  [Linear1 weight, PyTorch layout], bk: (n_out*128,)
    wr  : (n_out, n_out) [reduce weight, (out,in)],           br: (n_out,)
    Returns (B, Lq, Lk, n_out) in out_dtype (PyTorch layout) if head_axis_last else
    the lane-dense (B, n_out, Lq, Lk) layout (no extra HBM transpose).
    NOTE: projections are rounded to compute_dtype (bf16 by default) before QK^T, so
    results differ from the exact f32 PyTorch path within a bf16 rounding budget."""
    B, Lq, n_in = query.shape
    _, Lk, _ = key.shape
    n_out = wr.shape[0]
    proj = n_out * D_K
    assert wq_t.shape == (n_in, proj) and wk.shape == (proj, n_in)

    cb = jnp.dtype(compute_dtype).itemsize
    ob = jnp.dtype(out_dtype).itemsize
    sub = 16 if jnp.dtype(compute_dtype) == jnp.dtype(jnp.bfloat16) else 8

    # --- Generation-aware budgets: v5e/v6e have 128 MiB VMEM, v7x only 64 MiB. ---
    vmem_cap = _vmem_capacity_bytes()
    big_vmem = vmem_cap >= 96 * 1024 * 1024
    if tq_max is None:
        tq_max = 512 if big_vmem else 256
    if tk_max is None:
        tk_max = 256
    tq_max = max(sub, tq_max // sub * sub)
    tk_max = max(128, tk_max // 128 * 128)
    vmem_target = int(0.6 * vmem_cap)

    # Tile sizes: lane-dense TK (multiple of 128, full unmasked vst), sublane TQ.
    tq = min(tq_max, _round_up(Lq, sub))
    tk = min(tk_max, _round_up(Lk, 128))
    # Block a few batches per grid step for tiny shapes (amortize ~0.35 us/step);
    # capped so the static per-batch unroll stays small.
    bb = max(1, min(B, bb_max, (tq_max * tk_max) // max(tq * tk, 1)))

    def budget(bb_, tq_, tk_):
        byt = 0
        byt += 2 * bb_ * tq_ * n_in * cb                  # query blocks (dbl-buffered)
        byt += 2 * bb_ * n_in * tk_ * cb                  # key^T blocks
        byt += 2 * (n_in * proj) * cb + 2 * proj * 4      # wq + bq
        byt += 2 * (proj * n_in) * cb + 2 * proj * 4      # wk + bk
        byt += 2 * bb_ * n_out * tq_ * tk_ * ob           # output blocks
        byt += bb_ * tq_ * proj * cb                      # qp scratch
        byt += proj * tk_ * cb                            # kp scratch
        byt += bb_ * tq_ * proj * 4 + proj * tk_ * 4      # f32 pre-cast temporaries
        return int(byt * 1.2) + (4 << 20)                 # Mosaic scratch headroom

    # Shrink bb, then tiles, until the derived footprint fits the VMEM budget.
    while budget(bb, tq, tk) > vmem_target:
        if bb > 1:
            bb = (bb + 1) // 2
        elif tq > tk and tq > sub:
            tq = max(sub, (tq // 2) // sub * sub)
        elif tk > 128:
            tk = max(128, (tk // 2) // 128 * 128)
        elif tq > sub:
            tq = max(sub, (tq // 2) // sub * sub)
        else:
            break

    lq_p = _round_up(Lq, tq)
    lk_p = _round_up(Lk, tk)

    # v7x has 2 TensorCores: keep >=2 iterations on the parallel (bi, qi) axes.
    if (pl.cdiv(B, bb) * (lq_p // tq)) < 2:
        if B >= 2:
            bb = pl.cdiv(B, 2)
        elif (lq_p // tq) < 2 and Lq > sub:
            tq = max(sub, _round_up(pl.cdiv(Lq, 2), sub))
            lq_p = _round_up(Lq, tq)

    b_p = _round_up(B, bb)

    # Row sub-block for the head reduce: (n_out+1) live (rq, tk) f32 tiles <= ~40 vregs.
    rq = max(8, min(tq, ((40 * 1024) // ((n_out + 1) * tk)) // 8 * 8))
    while tq % rq:
        rq -= 8

    q = _pad_to(query.astype(compute_dtype), (b_p, lq_p, n_in))
    # Pre-transpose key once on the host (small input) so the kernel never transposes.
    k_t = _pad_to(jnp.transpose(key, (0, 2, 1)).astype(compute_dtype),
                  (b_p, n_in, lk_p))

    wq_c = wq_t.astype(compute_dtype)
    wk_c = wk.astype(compute_dtype)
    bq_c = bq.reshape(1, proj).astype(jnp.float32)
    bk_c = bk.reshape(proj, 1).astype(jnp.float32)
    wr_c = (wr / math.sqrt(D_K)).astype(jnp.float32)   # fold score scale (bias untouched)
    br_c = br.astype(jnp.float32)

    grid = (b_p // bb, lq_p // tq, lk_p // tk)
    vmem_limit = int(min(max(budget(bb, tq, tk), 32 << 20), int(0.75 * vmem_cap)))

    kernel = functools.partial(att_reduce_kernel, rq=rq)

    out = pl.pallas_call(
        kernel,
        out_shape=jax.ShapeDtypeStruct((b_p, n_out, lq_p, lk_p), out_dtype),
        grid=grid,
        in_specs=[
            pl.BlockSpec((bb, tq, n_in), lambda bi, qi, ki: (bi, qi, 0)),
            pl.BlockSpec((bb, n_in, tk), lambda bi, qi, ki: (bi, 0, ki)),
            # Constant index maps: weights/biases stay resident, never re-DMA'd.
            # TODO(synk): pipeline_mode=pl.Buffered(1) would single-buffer these and
            # halve their VMEM footprint at production n_in/proj sizes.
            pl.BlockSpec((n_in, proj), lambda bi, qi, ki: (0, 0)),
            pl.BlockSpec((1, proj), lambda bi, qi, ki: (0, 0)),
            pl.BlockSpec((proj, n_in), lambda bi, qi, ki: (0, 0)),
            pl.BlockSpec((proj, 1), lambda bi, qi, ki: (0, 0)),
            pl.BlockSpec(memory_space=pltpu.MemorySpace.SMEM),
            pl.BlockSpec(memory_space=pltpu.MemorySpace.SMEM),
        ],
        out_specs=pl.BlockSpec((bb, n_out, tq, tk),
                               lambda bi, qi, ki: (bi, 0, qi, ki)),
        scratch_shapes=[pltpu.VMEM((bb * tq, proj), compute_dtype),
                        pltpu.VMEM((proj, tk), compute_dtype)],
        compiler_params=pltpu.CompilerParams(
            # ki must remain innermost + "arbitrary": qp scratch is cached across it.
            dimension_semantics=("parallel", "parallel", "arbitrary"),
            vmem_limit_bytes=vmem_limit),
    )(q, k_t, wq_c, bq_c, wk_c, bk_c, wr_c, br_c)

    # TODO(synk): for n_in <= ~128 an algebraic rewrite (fold wr into per-output
    # n_in x n_in matrices M_o) would remove the head reduce entirely; skipped here
    # because it changes bf16 rounding of the folded weights.

    out = out[:B, :, :Lq, :Lk]                         # strip padding
    if head_axis_last:
        # PyTorch output layout. Consumers that can take (B, n_out, Lq, Lk) should
        # pass head_axis_last=False and avoid this full-tensor HBM round-trip.
        out = jnp.transpose(out, (0, 2, 3, 1))
    return out


def reference(query, key, wq_t, bq, wk, bk, wr, br, compute_dtype=jnp.float32):
    """Pure-JAX reference mirroring the PyTorch forward (optionally with the same
    bf16-operand / f32-accumulate numerics as the kernel)."""
    B, Lq, _ = query.shape
    Lk = key.shape[1]
    n_out = wr.shape[0]
    hp = jax.lax.Precision.HIGHEST
    q = query.astype(compute_dtype)
    k = key.astype(compute_dtype)
    Q = jnp.dot(q, wq_t.astype(compute_dtype), precision=hp,
                preferred_element_type=jnp.float32) + bq
    K = jnp.dot(k, wk.astype(compute_dtype).T, precision=hp,
                preferred_element_type=jnp.float32) + bk
    Q = Q.reshape(B, Lq, n_out, D_K).transpose(0, 2, 1, 3).astype(compute_dtype)
    K = K.reshape(B, Lk, n_out, D_K).transpose(0, 2, 1, 3).astype(compute_dtype)
    s = jnp.einsum('bhqd,bhkd->bhqk', Q, K, precision=hp,
                   preferred_element_type=jnp.float32) / math.sqrt(D_K)
    s = jnp.transpose(s, (0, 2, 3, 1))                  # (B, Lq, Lk, n_out)
    return jnp.einsum('bqkh,oh->bqko', s, wr, precision=hp,
                      preferred_element_type=jnp.float32) + br


if __name__ == "__main__":
    B, Lq, Lk = 2, 8, 8
    n_in, n_out = 32, 4

    root = jax.random.PRNGKey(0)
    ks = jax.random.split(root, 8)

    # Deterministic nn.Linear-style init: U(-1/sqrt(fan_in), 1/sqrt(fan_in)).
    bnd_in = 1.0 / math.sqrt(n_in)
    bnd_r = 1.0 / math.sqrt(n_out)
    wq_t = jax.random.uniform(ks[0], (n_in, n_out * D_K), jnp.float32, -bnd_in, bnd_in)
    bq = jax.random.uniform(ks[1], (n_out * D_K,), jnp.float32, -bnd_in, bnd_in)
    wk = jax.random.uniform(ks[2], (n_out * D_K, n_in), jnp.float32, -bnd_in, bnd_in)
    bk = jax.random.uniform(ks[3], (n_out * D_K,), jnp.float32, -bnd_in, bnd_in)
    wr = jax.random.uniform(ks[4], (n_out, n_out), jnp.float32, -bnd_r, bnd_r)
    br = jax.random.uniform(ks[5], (n_out,), jnp.float32, -bnd_r, bnd_r)

    query = jax.random.normal(ks[6], (B, Lq, n_in), jnp.float32)
    key = jax.random.normal(ks[7], (B, Lk, n_in), jnp.float32)

    out = att_reduce(query, key, wq_t, bq, wk, bk, wr, br)   # bf16 MXU operands
    out = jax.block_until_ready(out)
    assert out.shape == (B, Lq, Lk, n_out), out.shape

    # Tight check against a reference with identical bf16-operand numerics, and a
    # loose check against the exact f32 reference (bf16 operand-rounding budget).
    ref_bf16 = reference(query, key, wq_t, bq, wk, bk, wr, br,
                         compute_dtype=jnp.bfloat16)
    ref_f32 = reference(query, key, wq_t, bq, wk, bk, wr, br,
                        compute_dtype=jnp.float32)
    err_bf16 = float(jnp.max(jnp.abs(out - ref_bf16)))
    err_f32 = float(jnp.max(jnp.abs(out - ref_f32)))
    assert err_bf16 < 5e-3, ("kernel vs bf16-mirrored reference", err_bf16)
    assert err_f32 < 1.5e-1, ("kernel vs exact f32 reference", err_f32)

    print("KERNEL_OK")
</pallas_src>

<mosaic_0001>
module attributes {stable_mosaic.version = 11 : i64} {
  func.func @att_reduce_kernel(%arg0: i32, %arg1: i32, %arg2: i32, %arg3: memref<1x16x32xbf16, #tpu.memory_space<vmem>>, %arg4: memref<1x32x128xbf16, #tpu.memory_space<vmem>>, %arg5: memref<32x512xbf16, #tpu.memory_space<vmem>>, %arg6: memref<1x512xf32, #tpu.memory_space<vmem>>, %arg7: memref<512x32xbf16, #tpu.memory_space<vmem>>, %arg8: memref<512x1xf32, #tpu.memory_space<vmem>>, %arg9: memref<4x4xf32, #tpu.memory_space<smem>>, %arg10: memref<4xf32, #tpu.memory_space<smem>>, %arg11: memref<1x4x16x128xf32, #tpu.memory_space<vmem>>, %arg12: memref<16x512xbf16, #tpu.memory_space<vmem>>, %arg13: memref<512x128xbf16, #tpu.memory_space<vmem>>) attributes {dimension_semantics = [#tpu.dimension_semantics<parallel>, #tpu.dimension_semantics<parallel>, #tpu.dimension_semantics<arbitrary>], iteration_bounds = array<i64: 2, 1, 1>, scalar_prefetch = 0 : i64, scratch_operands = 2 : i64, tpu.core_type = #tpu.core_type<tc>, window_params = [{transform_indices = @transform_0, window_bounds = array<i64: 1, 16, 32>}, {transform_indices = @transform_1, window_bounds = array<i64: 1, 32, 128>}, {pipeline_mode = #tpu.pipeline_mode<synchronous>, transform_indices = @transform_2, window_bounds = array<i64: 32, 512>}, {pipeline_mode = #tpu.pipeline_mode<synchronous>, transform_indices = @transform_3, window_bounds = array<i64: 1, 512>}, {pipeline_mode = #tpu.pipeline_mode<synchronous>, transform_indices = @transform_4, window_bounds = array<i64: 512, 32>}, {pipeline_mode = #tpu.pipeline_mode<synchronous>, transform_indices = @transform_5, window_bounds = array<i64: 512, 1>}, {transform_indices = @transform_6, window_bounds = array<i64: 4, 4>}, {transform_indices = @transform_7, window_bounds = array<i64: 4>}, {transform_indices = @transform_8, window_bounds = array<i64: 1, 4, 16, 128>}]} {
    %c0_i32 = arith.constant 0 : i32
    %0 = arith.cmpi eq, %arg2, %c0_i32 : i32
    %1 = arith.extui %0 : i1 to i32
    %c0_i32_0 = arith.constant 0 : i32
    %2 = arith.cmpi ne, %1, %c0_i32_0 : i32
    scf.if %2 {
      %c0_75 = arith.constant 0 : index
      %c0_76 = arith.constant 0 : index
      %c0_77 = arith.constant 0 : index
      %108 = vector.load %arg3[%c0_75, %c0_76, %c0_77] : memref<1x16x32xbf16, #tpu.memory_space<vmem>>, vector<1x16x32xbf16>
      %109 = vector.shape_cast %108 : vector<1x16x32xbf16> to vector<16x32xbf16>
      %c0_78 = arith.constant 0 : index
      %c0_79 = arith.constant 0 : index
      %110 = vector.load %arg5[%c0_78, %c0_79] : memref<32x512xbf16, #tpu.memory_space<vmem>>, vector<32x512xbf16>
      %cst_80 = arith.constant dense<0.000000e+00> : vector<16x512xf32>
      %111 = tpu.matmul %109, %110, %cst_80 {dimension_numbers = #tpu.dot_dimension_numbers<[1], [0], [0], [1], [0, 0, 1, 1], [], []>} : vector<16x32xbf16>, vector<32x512xbf16>, vector<16x512xf32> -> vector<16x512xf32>
      %c0_81 = arith.constant 0 : index
      %c0_82 = arith.constant 0 : index
      %112 = vector.load %arg6[%c0_81, %c0_82] : memref<1x512xf32, #tpu.memory_space<vmem>>, vector<1x512xf32>
      %113 = vector.broadcast %112 : vector<1x512xf32> to vector<16x512xf32>
      %114 = arith.addf %111, %113 : vector<16x512xf32>
      %115 = arith.truncf %114 : vector<16x512xf32> to vector<16x512xbf16>
      %c0_83 = arith.constant 0 : index
      %c0_84 = arith.constant 0 : index
      %116 = vector.load %arg12[%c0_83, %c0_84] : memref<16x512xbf16, #tpu.memory_space<vmem>>, vector<16x512xbf16>
      tpu.vector_store %arg12[%c0_83, %c0_84], %115 {strides = array<i32>} : memref<16x512xbf16, #tpu.memory_space<vmem>>, vector<16x512xbf16>,
    } else {
    }
    %c0 = arith.constant 0 : index
    %c0_1 = arith.constant 0 : index
    %3 = vector.load %arg7[%c0, %c0_1] : memref<512x32xbf16, #tpu.memory_space<vmem>>, vector<512x32xbf16>
    %c0_2 = arith.constant 0 : index
    %c0_3 = arith.constant 0 : index
    %c0_4 = arith.constant 0 : index
    %4 = vector.load %arg4[%c0_2, %c0_3, %c0_4] : memref<1x32x128xbf16, #tpu.memory_space<vmem>>, vector<1x32x128xbf16>
    %5 = vector.shape_cast %4 : vector<1x32x128xbf16> to vector<32x128xbf16>
    %cst = arith.constant dense<0.000000e+00> : vector<512x128xf32>
    %6 = tpu.matmul %3, %5, %cst {dimension_numbers = #tpu.dot_dimension_numbers<[1], [0], [0], [1], [0, 0, 1, 1], [], []>} : vector<512x32xbf16>, vector<32x128xbf16>, vector<512x128xf32> -> vector<512x128xf32>
    %c0_5 = arith.constant 0 : index
    %c0_6 = arith.constant 0 : index
    %7 = vector.load %arg8[%c0_5, %c0_6] : memref<512x1xf32, #tpu.memory_space<vmem>>, vector<512x1xf32>
    %8 = vector.broadcast %7 : vector<512x1xf32> to vector<512x128xf32>
    %9 = arith.addf %6, %8 : vector<512x128xf32>
    %10 = arith.truncf %9 : vector<512x128xf32> to vector<512x128xbf16>
    %c0_7 = arith.constant 0 : index
    %c0_8 = arith.constant 0 : index
    %11 = vector.load %arg13[%c0_7, %c0_8] : memref<512x128xbf16, #tpu.memory_space<vmem>>, vector<512x128xbf16>
    tpu.vector_store %arg13[%c0_7, %c0_8], %10 {strides = array<i32>} : memref<512x128xbf16, #tpu.memory_space<vmem>>, vector<512x128xbf16>,
    %c0_9 = arith.constant 0 : index
    %c0_10 = arith.constant 0 : index
    %12 = vector.load %arg12[%c0_9, %c0_10] : memref<16x512xbf16, #tpu.memory_space<vmem>>, vector<16x128xbf16>
    %c0_11 = arith.constant 0 : index
    %c0_12 = arith.constant 0 : index
    %13 = vector.load %arg13[%c0_11, %c0_12] : memref<512x128xbf16, #tpu.memory_space<vmem>>, vector<128x128xbf16>
    %cst_13 = arith.constant dense<0.000000e+00> : vector<16x128xf32>
    %14 = tpu.matmul %12, %13, %cst_13 {dimension_numbers = #tpu.dot_dimension_numbers<[1], [0], [0], [1], [0, 0, 1, 1], [], []>} : vector<16x128xbf16>, vector<128x128xbf16>, vector<16x128xf32> -> vector<16x128xf32>
    %c0_14 = arith.constant 0 : index
    %c0_15 = arith.constant 0 : index
    %15 = memref.load %arg9[%c0_14, %c0_15] : memref<4x4xf32, #tpu.memory_space<smem>>
    %16 = vector.broadcast %15 : f32 to vector<16x128xf32>
    %17 = arith.mulf %16, %14 : vector<16x128xf32>
    %c0_16 = arith.constant 0 : index
    %18 = memref.load %arg10[%c0_16] : memref<4xf32, #tpu.memory_space<smem>>
    %19 = vector.broadcast %18 : f32 to vector<16x128xf32>
    %20 = arith.addf %17, %19 : vector<16x128xf32>
    %c1 = arith.constant 1 : index
    %c0_17 = arith.constant 0 : index
    %21 = memref.load %arg9[%c1, %c0_17] : memref<4x4xf32, #tpu.memory_space<smem>>
    %22 = vector.broadcast %21 : f32 to vector<16x128xf32>
    %23 = arith.mulf %22, %14 : vector<16x128xf32>
    %c1_18 = arith.constant 1 : index
    %24 = memref.load %arg10[%c1_18] : memref<4xf32, #tpu.memory_space<smem>>
    %25 = vector.broadcast %24 : f32 to vector<16x128xf32>
    %26 = arith.addf %23, %25 : vector<16x128xf32>
    %c2 = arith.constant 2 : index
    %c0_19 = arith.constant 0 : index
    %27 = memref.load %arg9[%c2, %c0_19] : memref<4x4xf32, #tpu.memory_space<smem>>
    %28 = vector.broadcast %27 : f32 to vector<16x128xf32>
    %29 = arith.mulf %28, %14 : vector<16x128xf32>
    %c2_20 = arith.constant 2 : index
    %30 = memref.load %arg10[%c2_20] : memref<4xf32, #tpu.memory_space<smem>>
    %31 = vector.broadcast %30 : f32 to vector<16x128xf32>
    %32 = arith.addf %29, %31 : vector<16x128xf32>
    %c3 = arith.constant 3 : index
    %c0_21 = arith.constant 0 : index
    %33 = memref.load %arg9[%c3, %c0_21] : memref<4x4xf32, #tpu.memory_space<smem>>
    %34 = vector.broadcast %33 : f32 to vector<16x128xf32>
    %35 = arith.mulf %34, %14 : vector<16x128xf32>
    %c3_22 = arith.constant 3 : index
    %36 = memref.load %arg10[%c3_22] : memref<4xf32, #tpu.memory_space<smem>>
    %37 = vector.broadcast %36 : f32 to vector<16x128xf32>
    %38 = arith.addf %35, %37 : vector<16x128xf32>
    %c0_23 = arith.constant 0 : index
    %c128 = arith.constant 128 : index
    %39 = vector.load %arg12[%c0_23, %c128] : memref<16x512xbf16, #tpu.memory_space<vmem>>, vector<16x128xbf16>
    %c128_24 = arith.constant 128 : index
    %c0_25 = arith.constant 0 : index
    %40 = vector.load %arg13[%c128_24, %c0_25] : memref<512x128xbf16, #tpu.memory_space<vmem>>, vector<128x128xbf16>
    %cst_26 = arith.constant dense<0.000000e+00> : vector<16x128xf32>
    %41 = tpu.matmul %39, %40, %cst_26 {dimension_numbers = #tpu.dot_dimension_numbers<[1], [0], [0], [1], [0, 0, 1, 1], [], []>} : vector<16x128xbf16>, vector<128x128xbf16>, vector<16x128xf32> -> vector<16x128xf32>
    %c0_27 = arith.constant 0 : index
    %c1_28 = arith.constant 1 : index
    %42 = memref.load %arg9[%c0_27, %c1_28] : memref<4x4xf32, #tpu.memory_space<smem>>
    %43 = vector.broadcast %42 : f32 to vector<16x128xf32>
    %44 = arith.mulf %43, %41 : vector<16x128xf32>
    %45 = arith.addf %20, %44 : vector<16x128xf32>
    %c1_29 = arith.constant 1 : index
    %c1_30 = arith.constant 1 : index
    %46 = memref.load %arg9[%c1_29, %c1_30] : memref<4x4xf32, #tpu.memory_space<smem>>
    %47 = vector.broadcast %46 : f32 to vector<16x128xf32>
    %48 = arith.mulf %47, %41 : vector<16x128xf32>
    %49 = arith.addf %26, %48 : vector<16x128xf32>
    %c2_31 = arith.constant 2 : index
    %c1_32 = arith.constant 1 : index
    %50 = memref.load %arg9[%c2_31, %c1_32] : memref<4x4xf32, #tpu.memory_space<smem>>
    %51 = vector.broadcast %50 : f32 to vector<16x128xf32>
    %52 = arith.mulf %51, %41 : vector<16x128xf32>
    %53 = arith.addf %32, %52 : vector<16x128xf32>
    %c3_33 = arith.constant 3 : index
    %c1_34 = arith.constant 1 : index
    %54 = memref.load %arg9[%c3_33, %c1_34] : memref<4x4xf32, #tpu.memory_space<smem>>
    %55 = vector.broadcast %54 : f32 to vector<16x128xf32>
    %56 = arith.mulf %55, %41 : vector<16x128xf32>
    %57 = arith.addf %38, %56 : vector<16x128xf32>
    %c0_35 = arith.constant 0 : index
    %c256 = arith.constant 256 : index
    %58 = vector.load %arg12[%c0_35, %c256] : memref<16x512xbf16, #tpu.memory_space<vmem>>, vector<16x128xbf16>
    %c256_36 = arith.constant 256 : index
    %c0_37 = arith.constant 0 : index
    %59 = vector.load %arg13[%c256_36, %c0_37] : memref<512x128xbf16, #tpu.memory_space<vmem>>, vector<128x128xbf16>
    %cst_38 = arith.constant dense<0.000000e+00> : vector<16x128xf32>
    %60 = tpu.matmul %58, %59, %cst_38 {dimension_numbers = #tpu.dot_dimension_numbers<[1], [0], [0], [1], [0, 0, 1, 1], [], []>} : vector<16x128xbf16>, vector<128x128xbf16>, vector<16x128xf32> -> vector<16x128xf32>
    %c0_39 = arith.constant 0 : index
    %c2_40 = arith.constant 2 : index
    %61 = memref.load %arg9[%c0_39, %c2_40] : memref<4x4xf32, #tpu.memory_space<smem>>
    %62 = vector.broadcast %61 : f32 to vector<16x128xf32>
    %63 = arith.mulf %62, %60 : vector<16x128xf32>
    %64 = arith.addf %45, %63 : vector<16x128xf32>
    %c1_41 = arith.constant 1 : index
    %c2_42 = arith.constant 2 : index
    %65 = memref.load %arg9[%c1_41, %c2_42] : memref<4x4xf32, #tpu.memory_space<smem>>
    %66 = vector.broadcast %65 : f32 to vector<16x128xf32>
    %67 = arith.mulf %66, %60 : vector<16x128xf32>
    %68 = arith.addf %49, %67 : vector<16x128xf32>
    %c2_43 = arith.constant 2 : index
    %c2_44 = arith.constant 2 : index
    %69 = memref.load %arg9[%c2_43, %c2_44] : memref<4x4xf32, #tpu.memory_space<smem>>
    %70 = vector.broadcast %69 : f32 to vector<16x128xf32>
    %71 = arith.mulf %70, %60 : vector<16x128xf32>
    %72 = arith.addf %53, %71 : vector<16x128xf32>
    %c3_45 = arith.constant 3 : index
    %c2_46 = arith.constant 2 : index
    %73 = memref.load %arg9[%c3_45, %c2_46] : memref<4x4xf32, #tpu.memory_space<smem>>
    %74 = vector.broadcast %73 : f32 to vector<16x128xf32>
    %75 = arith.mulf %74, %60 : vector<16x128xf32>
    %76 = arith.addf %57, %75 : vector<16x128xf32>
    %c0_47 = arith.constant 0 : index
    %c384 = arith.constant 384 : index
    %77 = vector.load %arg12[%c0_47, %c384] : memref<16x512xbf16, #tpu.memory_space<vmem>>, vector<16x128xbf16>
    %c384_48 = arith.constant 384 : index
    %c0_49 = arith.constant 0 : index
    %78 = vector.load %arg13[%c384_48, %c0_49] : memref<512x128xbf16, #tpu.memory_space<vmem>>, vector<128x128xbf16>
    %cst_50 = arith.constant dense<0.000000e+00> : vector<16x128xf32>
    %79 = tpu.matmul %77, %78, %cst_50 {dimension_numbers = #tpu.dot_dimension_numbers<[1], [0], [0], [1], [0, 0, 1, 1], [], []>} : vector<16x128xbf16>, vector<128x128xbf16>, vector<16x128xf32> -> vector<16x128xf32>
    %c0_51 = arith.constant 0 : index
    %c3_52 = arith.constant 3 : index
    %80 = memref.load %arg9[%c0_51, %c3_52] : memref<4x4xf32, #tpu.memory_space<smem>>
    %81 = vector.broadcast %80 : f32 to vector<16x128xf32>
    %82 = arith.mulf %81, %79 : vector<16x128xf32>
    %83 = arith.addf %64, %82 : vector<16x128xf32>
    %c1_53 = arith.constant 1 : index
    %c3_54 = arith.constant 3 : index
    %84 = memref.load %arg9[%c1_53, %c3_54] : memref<4x4xf32, #tpu.memory_space<smem>>
    %85 = vector.broadcast %84 : f32 to vector<16x128xf32>
    %86 = arith.mulf %85, %79 : vector<16x128xf32>
    %87 = arith.addf %68, %86 : vector<16x128xf32>
    %c2_55 = arith.constant 2 : index
    %c3_56 = arith.constant 3 : index
    %88 = memref.load %arg9[%c2_55, %c3_56] : memref<4x4xf32, #tpu.memory_space<smem>>
    %89 = vector.broadcast %88 : f32 to vector<16x128xf32>
    %90 = arith.mulf %89, %79 : vector<16x128xf32>
    %91 = arith.addf %72, %90 : vector<16x128xf32>
    %c3_57 = arith.constant 3 : index
    %c3_58 = arith.constant 3 : index
    %92 = memref.load %arg9[%c3_57, %c3_58] : memref<4x4xf32, #tpu.memory_space<smem>>
    %93 = vector.broadcast %92 : f32 to vector<16x128xf32>
    %94 = arith.mulf %93, %79 : vector<16x128xf32>
    %95 = arith.addf %76, %94 : vector<16x128xf32>
    %c0_59 = arith.constant 0 : index
    %c0_60 = arith.constant 0 : index
    %c0_61 = arith.constant 0 : index
    %c0_62 = arith.constant 0 : index
    %96 = vector.load %arg11[%c0_59, %c0_60, %c0_61, %c0_62] : memref<1x4x16x128xf32, #tpu.memory_space<vmem>>, vector<1x1x16x128xf32>
    %97 = vector.shape_cast %96 : vector<1x1x16x128xf32> to vector<16x128xf32>
    %98 = vector.shape_cast %83 : vector<16x128xf32> to vector<1x1x16x128xf32>
    tpu.vector_store %arg11[%c0_59, %c0_60, %c0_61, %c0_62], %98 {strides = array<i32>} : memref<1x4x16x128xf32, #tpu.memory_space<vmem>>, vector<1x1x16x128xf32>,
    %c0_63 = arith.constant 0 : index
    %c1_64 = arith.constant 1 : index
    %c0_65 = arith.constant 0 : index
    %c0_66 = arith.constant 0 : index
    %99 = vector.load %arg11[%c0_63, %c1_64, %c0_65, %c0_66] : memref<1x4x16x128xf32, #tpu.memory_space<vmem>>, vector<1x1x16x128xf32>
    %100 = vector.shape_cast %99 : vector<1x1x16x128xf32> to vector<16x128xf32>
    %101 = vector.shape_cast %87 : vector<16x128xf32> to vector<1x1x16x128xf32>
    tpu.vector_store %arg11[%c0_63, %c1_64, %c0_65, %c0_66], %101 {strides = array<i32>} : memref<1x4x16x128xf32, #tpu.memory_space<vmem>>, vector<1x1x16x128xf32>,
    %c0_67 = arith.constant 0 : index
    %c2_68 = arith.constant 2 : index
    %c0_69 = arith.constant 0 : index
    %c0_70 = arith.constant 0 : index
    %102 = vector.load %arg11[%c0_67, %c2_68, %c0_69, %c0_70] : memref<1x4x16x128xf32, #tpu.memory_space<vmem>>, vector<1x1x16x128xf32>
    %103 = vector.shape_cast %102 : vector<1x1x16x128xf32> to vector<16x128xf32>
    %104 = vector.shape_cast %91 : vector<16x128xf32> to vector<1x1x16x128xf32>
    tpu.vector_store %arg11[%c0_67, %c2_68, %c0_69, %c0_70], %104 {strides = array<i32>} : memref<1x4x16x128xf32, #tpu.memory_space<vmem>>, vector<1x1x16x128xf32>,
    %c0_71 = arith.constant 0 : index
    %c3_72 = arith.constant 3 : index
    %c0_73 = arith.constant 0 : index
    %c0_74 = arith.constant 0 : index
    %105 = vector.load %arg11[%c0_71, %c3_72, %c0_73, %c0_74] : memref<1x4x16x128xf32, #tpu.memory_space<vmem>>, vector<1x1x16x128xf32>
    %106 = vector.shape_cast %105 : vector<1x1x16x128xf32> to vector<16x128xf32>
    %107 = vector.shape_cast %95 : vector<16x128xf32> to vector<1x1x16x128xf32>
    tpu.vector_store %arg11[%c0_71, %c3_72, %c0_73, %c0_74], %107 {strides = array<i32>} : memref<1x4x16x128xf32, #tpu.memory_space<vmem>>, vector<1x1x16x128xf32>,
    return
  }
  func.func @transform_0(%arg0: i32, %arg1: i32, %arg2: i32) -> (i32, i32, i32) {
    %c0_i32 = arith.constant 0 : i32
    %c0_i32_0 = arith.constant 0 : i32
    return %arg0, %arg1, %c0_i32 : i32, i32, i32
  }
  func.func @transform_1(%arg0: i32, %arg1: i32, %arg2: i32) -> (i32, i32, i32) {
    %c0_i32 = arith.constant 0 : i32
    %c0_i32_0 = arith.constant 0 : i32
    return %arg0, %c0_i32, %arg2 : i32, i32, i32
  }
  func.func @transform_2(%arg0: i32, %arg1: i32, %arg2: i32) -> (i32, i32) {
    %c0_i32 = arith.constant 0 : i32
    %c0_i32_0 = arith.constant 0 : i32
    %c0_i32_1 = arith.constant 0 : i32
    return %c0_i32, %c0_i32_0 : i32, i32
  }
  func.func @transform_3(%arg0: i32, %arg1: i32, %arg2: i32) -> (i32, i32) {
    %c0_i32 = arith.constant 0 : i32
    %c0_i32_0 = arith.constant 0 : i32
    %c0_i32_1 = arith.constant 0 : i32
    return %c0_i32, %c0_i32_0 : i32, i32
  }
  func.func @transform_4(%arg0: i32, %arg1: i32, %arg2: i32) -> (i32, i32) {
    %c0_i32 = arith.constant 0 : i32
    %c0_i32_0 = arith.constant 0 : i32
    %c0_i32_1 = arith.constant 0 : i32
    return %c0_i32, %c0_i32_0 : i32, i32
  }
  func.func @transform_5(%arg0: i32, %arg1: i32, %arg2: i32) -> (i32, i32) {
    %c0_i32 = arith.constant 0 : i32
    %c0_i32_0 = arith.constant 0 : i32
    %c0_i32_1 = arith.constant 0 : i32
    return %c0_i32, %c0_i32_0 : i32, i32
  }
  func.func @transform_6(%arg0: i32, %arg1: i32, %arg2: i32) -> (i32, i32) {
    %c0_i32 = arith.constant 0 : i32
    %c0_i32_0 = arith.constant 0 : i32
    %c0_i32_1 = arith.constant 0 : i32
    return %c0_i32, %c0_i32_0 : i32, i32
  }
  func.func @transform_7(%arg0: i32, %arg1: i32, %arg2: i32) -> i32 {
    %c0_i32 = arith.constant 0 : i32
    %c0_i32_0 = arith.constant 0 : i32
    return %c0_i32 : i32
  }
  func.func @transform_8(%arg0: i32, %arg1: i32, %arg2: i32) -> (i32, i32, i32, i32) {
    %c0_i32 = arith.constant 0 : i32
    %c0_i32_0 = arith.constant 0 : i32
    return %arg0, %c0_i32, %arg1, %arg2 : i32, i32, i32, i32
  }
}

</mosaic_0001>

<llo_original>
// kernel: tpu_custom_call.1
$region0: #{tpu_custom_call.1}
  #allocation0 [shape = 'u32[]', space=smem, size = 0x4, offset = 0x4, fixed_abs, tag = 'smem constant byte address 0x4 - core index']
  #allocation1 [shape = 'u32[144,128]{1,0:T(1,128)}', space=vmem, size = 0x12000, scoped, tag = 'internal scratch']
  #allocation2 [shape = 'bf16[16,512]{1,0:T(16,128)(2,1)}', space=vmem, size = 0x4000, scoped, tag = 'scratch operand']
  #allocation3 [shape = 'bf16[512,128]{1,0:T(16,128)(2,1)}', space=vmem, size = 0x20000, scoped, tag = 'scratch operand']
  %s0 = inlined_call_operand.vmem [shape: bf16[2,16,32], index: 0, kind: input, shape index: {}]
  %s1 = inlined_call_operand.vmem [shape: bf16[2,32,128], index: 1, kind: input, shape index: {}]
  %s2 = inlined_call_operand.vmem [shape: bf16[32,512], index: 2, kind: input, shape index: {}]
  %s3 = inlined_call_operand.vmem [shape: f32[1,512], index: 3, kind: input, shape index: {}]
  %s4 = inlined_call_operand.vmem [shape: bf16[512,32], index: 4, kind: input, shape index: {}]
  %s5 = inlined_call_operand.vmem [shape: f32[512,1], index: 5, kind: input, shape index: {}]
  %s6 = inlined_call_operand.vmem [shape: f32[4,4], index: 6, kind: input, shape index: {}]
  %s7 = inlined_call_operand.vmem [shape: f32[4], index: 7, kind: input, shape index: {}]
  %s8 = inlined_call_operand.hbm [shape: f32[2,4,16,128], index: 8, kind: output, shape index: {}]
  %s9 = sld [smem:[#allocation0]]
  $region77: #{tpu_custom_call.1} parent=0
    _
  %s11 = ssub.s32 1, %s9
  %s12 = scalar_select 0, %s11, %s9
  $region1: #{tpu_custom_call.1} parent=0
    #allocation4 [shape = 'u8[2048]{0}', space=smem, size = 0x800, scoped, tag = 'input window, operand 6, single buffered']
    #allocation5 [shape = 's32[2]{0}', space=sflag, size = 0x8, scoped, tag = 'scoped memory for tpu_custom_call.1']
    #allocation6 [shape = 's32[2]{0}', space=sflag, size = 0x8, scoped, tag = 'scoped memory for tpu_custom_call.1']
    #allocation7 [shape = 'u8[512]{0}', space=smem, size = 0x200, scoped, tag = 'input window, operand 7, single buffered']
    #allocation8 [shape = 's32[1]{0}', space=sflag, size = 0x4, scoped, tag = 'scoped memory for tpu_custom_call.1']
    #allocation9 [shape = 'u8[65536]{0}', space=vmem, size = 0x10000, scoped, tag = 'output window, operand 0']
    %13 = vsyncpa [#allocation6], 0
    %14 = vsyncpa [#allocation8], 0
    %15 = vsyncpa [#allocation5], 0
    %s16 = scalar_lea.sflag [#allocation5], 1
    %17 = vsyncpa %s16, 0
    loop: start=0, step=1, limit=4
    $region2: #{tpu_custom_call.1} parent=1 // loop_pre_header
      _
    $region3: #{tpu_custom_call.1} parent=1 // loop_header
      %s19 = sphi 0, %s23
      %p20 = scmp.ge.s32.totalorder %s19, 4
      %s26 = sphi 0, %s45
      %s27 = sphi 0, %s41
      %s28 = sphi 0, %s37
      %s29 = sphi 0, %s26
      %s30 = sphi 0, %s27
      %s31 = sphi 0, %s28
      %s32 = sphi 0, %s29
      %s33 = sphi 0, %s30
      %s34 = sphi 0, %s31
      %s50 = sphi 0, %s52
      %s53 = sphi 0, %s50
      %s54 = sphi 0, %s53
      %s70 = sphi 0, %s54
      %s78 = sphi 0, %s80
      %s81 = sphi 0, %s78
      %s82 = sphi 0, %s81
      %s98 = sphi 0, %s82
      %s102 = sphi 0, %s102
      %s104 = sphi 0, %s102
      %s105 = sphi 0, %s104
      %s119 = sphi 0, %s105
      %s123 = sphi 0, %s123
      %s125 = sphi 0, %s123
      %s126 = sphi 0, %s125
      %s140 = sphi 0, %s126
      %s144 = sphi 0, %s144
      %s146 = sphi 0, %s144
      %s147 = sphi 0, %s146
      %s161 = sphi 0, %s147
      %s165 = sphi 0, %s165
      %s167 = sphi 0, %s165
      %s168 = sphi 0, %s167
      %s182 = sphi 0, %s168
      %s186 = sphi 0, %s186
      %s188 = sphi 0, %s186
      %s189 = sphi 0, %s188
      %s203 = sphi 0, %s189
      %s207 = sphi 0, %s207
      %s209 = sphi 0, %s207
      %s210 = sphi 0, %s209
      %s224 = sphi 0, %s210
      %s234 = sphi 0, %s236
      %s237 = sphi 0, %s234
      %s238 = sphi 0, %s237
      %s254 = sphi 0, %s238
    $region4: #{tpu_custom_call.1} parent=1 // loop_header_branch
      %22 = sbr.rel (%p20) target = $region8
    $region5: #{tpu_custom_call.1} parent=1 // loop_body
      %s24 = ssub.s32 %s19, 1
      %s25 = ssub.s32 %s19, 2
      %s35 = sadd.s32 1, %s28
      %p36 = scmp.ge.s32.totalorder %s35, 1
      %s37 = scalar_select %p36, 0, %s35
      %s38 = sadd.s32 1, %s27
      %s39 = scalar_select %p36, %s38, %s27
      %p40 = scmp.ge.s32.totalorder %s39, 1
      %s41 = scalar_select %p40, 0, %s39
      %s42 = sadd.s32 1, %s26
      %s43 = scalar_select %p40, %s42, %s26
      %p44 = scmp.ge.s32.totalorder %s43, 2
      %s45 = scalar_select %p44, 0, %s43
      %s46 = ssub.s32 %s26, %s45
      %s47 = ssub.s32 %s27, %s41
      %s48 = sor.u32 %s46, %s47
      %p49 = scmp.eq.s32.totalorder %s48, 0
      %s51 = sadd.s32 %s50, 1
      %s52 = scalar_select %p49, %s50, %s51
      %p55 = pneg %p49
      %p56 = scmp.eq.s32.totalorder %s19, 1
      %p57 = por %p55, %p56
      %p58 = scmp.ne.s32.totalorder %s50, %s53
      %p59 = scmp.eq.s32.totalorder %s19, 0
      %p60 = por %p58, %p59
      %p61 = scmp.ne.s32.totalorder %s50, %s53
      %p62 = scmp.eq.s32.totalorder %s24, 1
      %p63 = por %p61, %p62
      %p64 = scmp.ne.s32.totalorder %s53, %s54
      %p65 = scmp.eq.s32.totalorder %s24, 0
      %p66 = por %p64, %p65
      %p67 = scmp.ne.s32.totalorder %s53, %s54
      %p68 = scmp.eq.s32.totalorder %s25, 1
      %p69 = por %p67, %p68
      %p71 = scmp.ne.s32.totalorder %s54, %s70
      %p72 = scmp.eq.s32.totalorder %s25, 0
      %p73 = por %p71, %p72
      %s74 = ssub.s32 %s26, %s45
      %s75 = ssub.s32 %s28, %s37
      %s76 = sor.u32 %s74, %s75
      %p77 = scmp.eq.s32.totalorder %s76, 0
      %s79 = sadd.s32 %s78, 1
      %s80 = scalar_select %p77, %s78, %s79
      %p83 = pneg %p77
      %p84 = scmp.eq.s32.totalorder %s19, 1
      %p85 = por %p83, %p84
      %p86 = scmp.ne.s32.totalorder %s78, %s81
      %p87 = scmp.eq.s32.totalorder %s19, 0
      %p88 = por %p86, %p87
      %p89 = scmp.ne.s32.totalorder %s78, %s81
      %p90 = scmp.eq.s32.totalorder %s24, 1
      %p91 = por %p89, %p90
      %p92 = scmp.ne.s32.totalorder %s81, %s82
      %p93 = scmp.eq.s32.totalorder %s24, 0
      %p94 = por %p92, %p93
      %p95 = scmp.ne.s32.totalorder %s81, %s82
      %p96 = scmp.eq.s32.totalorder %s25, 1
      %p97 = por %p95, %p96
      %p99 = scmp.ne.s32.totalorder %s82, %s98
      %p100 = scmp.eq.s32.totalorder %s25, 0
      %p101 = por %p99, %p100
      %s103 = sadd.s32 %s102, 1
      %p106 = scmp.eq.s32.totalorder %s19, 1
      %p107 = scmp.ne.s32.totalorder %s102, %s104
      %p108 = scmp.eq.s32.totalorder %s19, 0
      %p109 = por %p107, %p108
      %p110 = scmp.ne.s32.totalorder %s102, %s104
      %p111 = scmp.eq.s32.totalorder %s24, 1
      %p112 = por %p110, %p111
      %p113 = scmp.ne.s32.totalorder %s104, %s105
      %p114 = scmp.eq.s32.totalorder %s24, 0
      %p115 = por %p113, %p114
      %p116 = scmp.ne.s32.totalorder %s104, %s105
      %p117 = scmp.eq.s32.totalorder %s25, 1
      %p118 = por %p116, %p117
      %p120 = scmp.ne.s32.totalorder %s105, %s119
      %p121 = scmp.eq.s32.totalorder %s25, 0
      %p122 = por %p120, %p121
      %s124 = sadd.s32 %s123, 1
      %p127 = scmp.eq.s32.totalorder %s19, 1
      %p128 = scmp.ne.s32.totalorder %s123, %s125
      %p129 = scmp.eq.s32.totalorder %s19, 0
      %p130 = por %p128, %p129
      %p131 = scmp.ne.s32.totalorder %s123, %s125
      %p132 = scmp.eq.s32.totalorder %s24, 1
      %p133 = por %p131, %p132
      %p134 = scmp.ne.s32.totalorder %s125, %s126
      %p135 = scmp.eq.s32.totalorder %s24, 0
      %p136 = por %p134, %p135
      %p137 = scmp.ne.s32.totalorder %s125, %s126
      %p138 = scmp.eq.s32.totalorder %s25, 1
      %p139 = por %p137, %p138
      %p141 = scmp.ne.s32.totalorder %s126, %s140
      %p142 = scmp.eq.s32.totalorder %s25, 0
      %p143 = por %p141, %p142
      %s145 = sadd.s32 %s144, 1
      %p148 = scmp.eq.s32.totalorder %s19, 1
      %p149 = scmp.ne.s32.totalorder %s144, %s146
      %p150 = scmp.eq.s32.totalorder %s19, 0
      %p151 = por %p149, %p150
      %p152 = scmp.ne.s32.totalorder %s144, %s146
      %p153 = scmp.eq.s32.totalorder %s24, 1
      %p154 = por %p152, %p153
      %p155 = scmp.ne.s32.totalorder %s146, %s147
      %p156 = scmp.eq.s32.totalorder %s24, 0
      %p157 = por %p155, %p156
      %p158 = scmp.ne.s32.totalorder %s146, %s147
      %p159 = scmp.eq.s32.totalorder %s25, 1
      %p160 = por %p158, %p159
      %p162 = scmp.ne.s32.totalorder %s147, %s161
      %p163 = scmp.eq.s32.totalorder %s25, 0
      %p164 = por %p162, %p163
      %s166 = sadd.s32 %s165, 1
      %p169 = scmp.eq.s32.totalorder %s19, 1
      %p170 = scmp.ne.s32.totalorder %s165, %s167
      %p171 = scmp.eq.s32.totalorder %s19, 0
      %p172 = por %p170, %p171
      %p173 = scmp.ne.s32.totalorder %s165, %s167
      %p174 = scmp.eq.s32.totalorder %s24, 1
      %p175 = por %p173, %p174
      %p176 = scmp.ne.s32.totalorder %s167, %s168
      %p177 = scmp.eq.s32.totalorder %s24, 0
      %p178 = por %p176, %p177
      %p179 = scmp.ne.s32.totalorder %s167, %s168
      %p180 = scmp.eq.s32.totalorder %s25, 1
      %p181 = por %p179, %p180
      %p183 = scmp.ne.s32.totalorder %s168, %s182
      %p184 = scmp.eq.s32.totalorder %s25, 0
      %p185 = por %p183, %p184
      %s187 = sadd.s32 %s186, 1
      %p190 = scmp.eq.s32.totalorder %s19, 1
      %p191 = scmp.ne.s32.totalorder %s186, %s188
      %p192 = scmp.eq.s32.totalorder %s19, 0
      %p193 = por %p191, %p192
      %p194 = scmp.ne.s32.totalorder %s186, %s188
      %p195 = scmp.eq.s32.totalorder %s24, 1
      %p196 = por %p194, %p195
      %p197 = scmp.ne.s32.totalorder %s188, %s189
      %p198 = scmp.eq.s32.totalorder %s24, 0
      %p199 = por %p197, %p198
      %p200 = scmp.ne.s32.totalorder %s188, %s189
      %p201 = scmp.eq.s32.totalorder %s25, 1
      %p202 = por %p200, %p201
      %p204 = scmp.ne.s32.totalorder %s189, %s203
      %p205 = scmp.eq.s32.totalorder %s25, 0
      %p206 = por %p204, %p205
      %s208 = sadd.s32 %s207, 1
      %p211 = scmp.eq.s32.totalorder %s19, 1
      %p212 = scmp.ne.s32.totalorder %s207, %s209
      %p213 = scmp.eq.s32.totalorder %s19, 0
      %p214 = por %p212, %p213
      %p215 = scmp.ne.s32.totalorder %s207, %s209
      %p216 = scmp.eq.s32.totalorder %s24, 1
      %p217 = por %p215, %p216
      %p218 = scmp.ne.s32.totalorder %s209, %s210
      %p219 = scmp.eq.s32.totalorder %s24, 0
      %p220 = por %p218, %p219
      %p221 = scmp.ne.s32.totalorder %s209, %s210
      %p222 = scmp.eq.s32.totalorder %s25, 1
      %p223 = por %p221, %p222
      %p225 = scmp.ne.s32.totalorder %s210, %s224
      %p226 = scmp.eq.s32.totalorder %s25, 0
      %p227 = por %p225, %p226
      %s228 = ssub.s32 %s26, %s45
      %s229 = ssub.s32 %s27, %s41
      %s230 = sor.u32 %s228, %s229
      %s231 = ssub.s32 %s28, %s37
      %s232 = sor.u32 %s230, %s231
      %p233 = scmp.eq.s32.totalorder %s232, 0
      %s235 = sadd.s32 %s234, 1
      %s236 = scalar_select %p233, %s234, %s235
      %p239 = pneg %p233
      %p240 = scmp.eq.s32.totalorder %s19, 1
      %p241 = por %p239, %p240
      %p242 = scmp.ne.s32.totalorder %s234, %s237
      %p243 = scmp.eq.s32.totalorder %s19, 0
      %p244 = por %p242, %p243
      %p245 = scmp.ne.s32.totalorder %s234, %s237
      %p246 = scmp.eq.s32.totalorder %s24, 1
      %p247 = por %p245, %p246
      %p248 = scmp.ne.s32.totalorder %s237, %s238
      %p249 = scmp.eq.s32.totalorder %s24, 0
      %p250 = por %p248, %p249
      %p251 = scmp.ne.s32.totalorder %s237, %s238
      %p252 = scmp.eq.s32.totalorder %s25, 1
      %p253 = por %p251, %p252
      %p255 = scmp.ne.s32.totalorder %s238, %s254
      %p256 = scmp.eq.s32.totalorder %s25, 0
      %p257 = por %p255, %p256
      %p258 = scmp.le.s32.totalorder 1, %s19
      %p259 = scmp.lt.s32.totalorder %s19, 3
      %p260 = pnand %p258, %p259
      %p261 = pneg %p260
      // Predicated region
      $region9: #{tpu_custom_call.1} parent=5 // pred_check
        _
      $region10: #{tpu_custom_call.1} parent=5 // pred_check_branch
        %263 = sbr.rel (%p260) target = $region12
      $region11: #{tpu_custom_call.1} parent=5 // pred_region
        %s264 = ssub.s32 %s19, 1
        // Predicated region
        $region13: #{tpu_custom_call.1} parent=11 // pred_check
          %p265 = pneg %p115
        $region14: #{tpu_custom_call.1} parent=11 // pred_check_branch
          %267 = sbr.rel (%p265) target = $region16
        $region15: #{tpu_custom_call.1} parent=11 // pred_region
          _
        $region16: #{tpu_custom_call.1} parent=11 // pred_fallthru
          _
        // Predicated region
        $region17: #{tpu_custom_call.1} parent=11 // pred_check
          %p268 = pneg %p136
        $region18: #{tpu_custom_call.1} parent=11 // pred_check_branch
          %270 = sbr.rel (%p268) target = $region20
        $region19: #{tpu_custom_call.1} parent=11 // pred_region
          _
        $region20: #{tpu_custom_call.1} parent=11 // pred_fallthru
          _
        // Predicated region
        $region21: #{tpu_custom_call.1} parent=11 // pred_check
          %p271 = pneg %p157
        $region22: #{tpu_custom_call.1} parent=11 // pred_check_branch
          %273 = sbr.rel (%p271) target = $region24
        $region23: #{tpu_custom_call.1} parent=11 // pred_region
          _
        $region24: #{tpu_custom_call.1} parent=11 // pred_fallthru
          _
        // Predicated region
        $region25: #{tpu_custom_call.1} parent=11 // pred_check
          %p274 = pneg %p178
        $region26: #{tpu_custom_call.1} parent=11 // pred_check_branch
          %276 = sbr.rel (%p274) target = $region28
        $region27: #{tpu_custom_call.1} parent=11 // pred_region
          _
        $region28: #{tpu_custom_call.1} parent=11 // pred_fallthru
          _
        // Predicated region
        $region29: #{tpu_custom_call.1} parent=11 // pred_check
          %p277 = pneg %p199
        $region30: #{tpu_custom_call.1} parent=11 // pred_check_branch
          %279 = sbr.rel (%p277) target = $region32
        $region31: #{tpu_custom_call.1} parent=11 // pred_region
          %s281 = ssub.s32 64, 64
          %282 = vsyncadd [#allocation6], %s281
          %s284 = sshll.u32 %s6, 4
          %s285 = int_to_ptr.vmem [resolvable:$true] %s284
          %287 = dma.vmem_to_smem %s285, 64, [#allocation4], [#allocation6]
        $region32: #{tpu_custom_call.1} parent=11 // pred_fallthru
          _
        // Predicated region
        $region33: #{tpu_custom_call.1} parent=11 // pred_check
          %p288 = pneg %p220
        $region34: #{tpu_custom_call.1} parent=11 // pred_check_branch
          %290 = sbr.rel (%p288) target = $region36
        $region35: #{tpu_custom_call.1} parent=11 // pred_region
          %s292 = ssub.s32 16, 16
          %293 = vsyncadd [#allocation8], %s292
          %s295 = sshll.u32 %s7, 4
          %s296 = int_to_ptr.vmem [resolvable:$true] %s295
          %298 = dma.vmem_to_smem %s296, 16, [#allocation7], [#allocation8]
        $region36: #{tpu_custom_call.1} parent=11 // pred_fallthru
          _
      $region12: #{tpu_custom_call.1} parent=5 // pred_fallthru
        _
      %p299 = scmp.lt.s32.totalorder %s19, 2
      // Predicated region
      $region37: #{tpu_custom_call.1} parent=5 // pred_check
        %p300 = pneg %p299
      $region38: #{tpu_custom_call.1} parent=5 // pred_check_branch
        %302 = sbr.rel (%p300) target = $region40
      $region39: #{tpu_custom_call.1} parent=5 // pred_region
        // Predicated region
        $region41: #{tpu_custom_call.1} parent=39 // pred_check
          %p303 = pneg %p60
        $region42: #{tpu_custom_call.1} parent=39 // pred_check_branch
          %305 = sbr.rel (%p303) target = $region44
        $region43: #{tpu_custom_call.1} parent=39 // pred_region
          %s306 = smul.u32 2, %s27
          %p307 = scmp.lt.s32.totalorder %s26, 1
          %s308 = scalar_select %p307, %s26, 1
          %p309 = scmp.lt.s32.totalorder %s306, 1
          %s310 = scalar_select %p309, %s306, 1
          %s311 = smul.addr %s308, 2
          %s312 = sadd.s32 %s310, %s311
          %s313 = smul.addr %s312, 4
          %s314 = scalar_lea.vmem %s0, %s313
          %s315 = smul.u32 2, %s27
        $region44: #{tpu_custom_call.1} parent=39 // pred_fallthru
          _
        // Predicated region
        $region45: #{tpu_custom_call.1} parent=39 // pred_check
          %p316 = pneg %p88
        $region46: #{tpu_custom_call.1} parent=39 // pred_check_branch
          %318 = sbr.rel (%p316) target = $region48
        $region47: #{tpu_custom_call.1} parent=39 // pred_region
          %p319 = scmp.lt.s32.totalorder %s26, 1
          %s320 = scalar_select %p319, %s26, 1
          %p321 = scmp.lt.s32.totalorder %s28, 0
          %s322 = scalar_select %p321, %s28, 0
          %s323 = smul.addr %s320, 4
          %s324 = sadd.s32 %s322, %s323
          %s325 = smul.addr %s324, 4
          %s326 = scalar_lea.vmem %s1, %s325
        $region48: #{tpu_custom_call.1} parent=39 // pred_fallthru
          _
      $region40: #{tpu_custom_call.1} parent=5 // pred_fallthru
        _
      %p327 = scmp.le.s32.totalorder 1, %s19
      %p328 = scmp.lt.s32.totalorder %s19, 3
      %p329 = pnand %p327, %p328
      %p330 = pneg %p329
      // Predicated region
      $region49: #{tpu_custom_call.1} parent=5 // pred_check
        _
      $region50: #{tpu_custom_call.1} parent=5 // pred_check_branch
        %332 = sbr.rel (%p329) target = $region52
      $region51: #{tpu_custom_call.1} parent=5 // pred_region
        %s333 = ssub.s32 %s19, 1
        // Predicated region
        $region53: #{tpu_custom_call.1} parent=51 // pred_check
          %p334 = pneg %p199
        $region54: #{tpu_custom_call.1} parent=51 // pred_check_branch
          %336 = sbr.rel (%p334) target = $region56
        $region55: #{tpu_custom_call.1} parent=51 // pred_region
          %337 = dma.done [#allocation6], 64
        $region56: #{tpu_custom_call.1} parent=51 // pred_fallthru
          _
        // Predicated region
        $region57: #{tpu_custom_call.1} parent=51 // pred_check
          %p338 = pneg %p220
        $region58: #{tpu_custom_call.1} parent=51 // pred_check_branch
          %340 = sbr.rel (%p338) target = $region60
        $region59: #{tpu_custom_call.1} parent=51 // pred_region
          %341 = dma.done [#allocation8], 16
        $region60: #{tpu_custom_call.1} parent=51 // pred_fallthru
          _
        %342 = sfence
        %s343 = smul.u32 2, %s30
        %p344 = scmp.lt.s32.totalorder %s29, 1
        %s345 = scalar_select %p344, %s29, 1
        %p346 = scmp.lt.s32.totalorder %s343, 1
        %s347 = scalar_select %p346, %s343, 1
        %s348 = smul.addr %s345, 2
        %s349 = sadd.s32 %s347, %s348
        %s350 = smul.addr %s349, 4
        %s351 = scalar_lea.vmem %s0, %s350
        %p352 = pneg %p66
        %p353 = pneg %p63
        %p354 = scmp.lt.s32.totalorder %s29, 1
        %s355 = scalar_select %p354, %s29, 1
        %p356 = scmp.lt.s32.totalorder %s31, 0
        %s357 = scalar_select %p356, %s31, 0
        %s358 = smul.addr %s355, 4
        %s359 = sadd.s32 %s357, %s358
        %s360 = smul.addr %s359, 4
        %s361 = scalar_lea.vmem %s1, %s360
        %p362 = pneg %p94
        %p363 = pneg %p91
        %p364 = pneg %p115
        %p365 = pneg %p112
        %p366 = pneg %p136
        %p367 = pneg %p133
        %p368 = pneg %p157
        %p369 = pneg %p154
        %p370 = pneg %p178
        %p371 = pneg %p175
        %p372 = pneg %p199
        %p373 = pneg %p196
        %p374 = pneg %p220
        %p375 = pneg %p217
        %p376 = pneg %p250
        %p377 = pneg %p247
        %s378 = sand.u32 %s237, 1
        %s379 = scalar_lea.sflag [#allocation5], %s378
        %s380 = sand.u32 %s237, 1
        %s381 = smul.addr %s380, 64
        %s382 = scalar_lea.vmem [#allocation9], %s381
        %s383 = smul.u32 2, %s30
        %p384 = scmp.lt.s32.totalorder %s29, 1
        %s385 = scalar_select %p384, %s29, 1
        %p386 = scmp.lt.s32.totalorder %s383, 1
        %s387 = scalar_select %p386, %s383, 1
        %s388 = smul.addr %s385, 2
        %s389 = sadd.s32 %s387, %s388
        %s390 = smul.addr %s389, 4
        %s391 = scalar_lea.vmem %s0, %s390
        %s392 = smul.u32 2, %s30
        %p393 = scmp.lt.s32.totalorder %s29, 1
        %s394 = scalar_select %p393, %s29, 1
        %p395 = scmp.lt.s32.totalorder %s31, 0
        %s396 = scalar_select %p395, %s31, 0
        %s397 = smul.addr %s394, 4
        %s398 = sadd.s32 %s396, %s397
        %s399 = smul.addr %s398, 4
        %s400 = scalar_lea.vmem %s1, %s399
        %s401 = smul.u32 2, %s30
        %p403 = scmp.eq.s32.totalorder %s31, 0
        // Predicated region
        $region61: #{tpu_custom_call.1} parent=51 // pred_check
          %p404 = pneg %p403
        $region62: #{tpu_custom_call.1} parent=51 // pred_check_branch
          %406 = sbr.rel (%p404) target = $region64
        $region63: #{tpu_custom_call.1} parent=51 // pred_region
          %v407 = vld [vmem:[%s391] sm:$0xf]
          %v408 = vld [vmem:[%s391 + $0x4] sm:$0xf]
          %v409 = vld [vmem:[%s2] sm:$0xff]
          %v410 = vld [vmem:[%s2 + $0x8] sm:$0xff]
          %v411 = vld [vmem:[%s2 + $0x10] sm:$0xff]
          %v412 = vld [vmem:[%s2 + $0x18] sm:$0xff]
          %v413 = vld [vmem:[%s2 + $0x20] sm:$0xff]
          %v414 = vld [vmem:[%s2 + $0x28] sm:$0xff]
          %v415 = vld [vmem:[%s2 + $0x30] sm:$0xff]
          %v416 = vld [vmem:[%s2 + $0x38] sm:$0xff]
          %v417 = vld [vmem:[%s3] sm:$0xf]
          %v419 = vlaneseq
          %v420 = vshrl.u32 %v419, 7
          %v421 = vsub.s32 0, %v420
          %v422 = vrot.slane %v417, %v421
          %v423 = vlaneseq
          %v424 = vshrl.u32 %v423, 7
          %v425 = vsub.s32 1, %v424
          %v426 = vrot.slane %v417, %v425
          %v427 = vlaneseq
          %v428 = vshrl.u32 %v427, 7
          %v429 = vsub.s32 2, %v428
          %v430 = vrot.slane %v417, %v429
          %v431 = vlaneseq
          %v432 = vshrl.u32 %v431, 7
          %v433 = vsub.s32 3, %v432
          %v434 = vrot.slane %v417, %v433
          %v441 = vunpack.c.l.b16 %v407
          %v442 = vunpack.c.l.b16 %v408
          %v443 = vpack.c.b16 %v442, %v441
          %v452 = vunpack.c.l.b16 %v409
          %v453 = vunpack.c.h.b16 %v409
          %v454 = vunpack.c.l.b16 %v410
          %v455 = vunpack.c.h.b16 %v410
          %v456 = vunpack.c.l.b16 %v411
          %v457 = vunpack.c.h.b16 %v411
          %v458 = vunpack.c.l.b16 %v412
          %v459 = vunpack.c.h.b16 %v412
          %v460 = vunpack.c.l.b16 %v413
          %v461 = vunpack.c.h.b16 %v413
          %v462 = vunpack.c.l.b16 %v414
          %v463 = vunpack.c.h.b16 %v414
          %v464 = vunpack.c.l.b16 %v415
          %v465 = vunpack.c.h.b16 %v415
          %v466 = vunpack.c.l.b16 %v416
          %v467 = vunpack.c.h.b16 %v416
          %v468 = vpack.c.b16 %v456, %v452
          %v469 = vpack.c.b16 %v457, %v453
          %v470 = vpack.c.b16 %v458, %v454
          %v471 = vpack.c.b16 %v459, %v455
          %v472 = vpack.c.b16 %v464, %v460
          %v473 = vpack.c.b16 %v465, %v461
          %v474 = vpack.c.b16 %v466, %v462
          %v475 = vpack.c.b16 %v467, %v463
          %vm484 = vcmask 261120
          %v486 = vsel %vm484, %v443, 0
          %488 = vmatprep.subr.bf16.mxu0 %v469
          %489 = vmatpush1.bf16.msra.mxu0 %v468
          %490 = vmatprep.subr.bf16.mxu0 %v473
          %491 = vmatpush1.bf16.msra.mxu0 %v472
          %492 = vmatprep.subr.bf16.mxu0 0
          %493 = vmatpush1.bf16.msra.mxu0 0
          %494 = vmatprep.subr.bf16.mxu0 0
          %495 = vmatpush1.bf16.msra.mxu0 0
          %496 = vmatprep.subr.bf16.mxu0 0
          %497 = vmatpush1.bf16.msra.mxu0 0
          %498 = vmatprep.subr.bf16.mxu0 0
          %499 = vmatpush1.bf16.msra.mxu0 0
          %500 = vmatprep.subr.bf16.mxu0 0
          %501 = vmatpush1.bf16.msra.mxu0 0
          %502 = vmatprep.subr.bf16.mxu0 0
          %503 = vmatpush1.bf16.msra.mxu0 0
          %504 = vmatprep.subr.bf16.mxu0 0
          %505 = vmatpush1.bf16.msra.mxu0 0
          %506 = vmatprep.subr.bf16.mxu0 0
          %507 = vmatpush1.bf16.msra.mxu0 0
          %508 = vmatprep.subr.bf16.mxu0 0
          %509 = vmatpush1.bf16.msra.mxu0 0
          %510 = vmatprep.subr.bf16.mxu0 0
          %511 = vmatpush1.bf16.msra.mxu0 0
          %512 = vmatprep.subr.bf16.mxu0 0
          %513 = vmatpush1.bf16.msra.mxu0 0
          %514 = vmatprep.subr.bf16.mxu0 0
          %515 = vmatpush1.bf16.msra.mxu0 0
          %516 = vmatprep.subr.bf16.mxu0 0
          %517 = vmatpush1.bf16.msra.mxu0 0
          %518 = vmatprep.subr.bf16.mxu0 0
          %519 = vmatpush1.bf16.msra.mxu0 0
          %520 = vmatprep.mubr.bf16.mxu0 0
          %521 = vmatmul.mubr.bf16.gmra.mrb[0].mxu0 %v486
          %v522 = vpop.f32.mrb[0].mxu0
          %v523 = vadd.f32 %v422, %v522
          %v524 = vpop.f32.mrb[0].mxu0
          %v525 = vadd.f32 %v426, %v524
          %v526 = vpop.f32.mrb[0].mxu0
          %v527 = vadd.f32 %v422, %v526
          %v528 = vpop.f32.mrb[0].mxu0
          %v529 = vadd.f32 %v426, %v528
          %530 = vdwg.mxu0
          %531 = vmatprep.subr.bf16.mxu0 %v471
          %532 = vmatpush1.bf16.msra.mxu0 %v470
          %533 = vmatprep.subr.bf16.mxu0 %v475
          %534 = vmatpush1.bf16.msra.mxu0 %v474
          %535 = vmatprep.subr.bf16.mxu0 0
          %536 = vmatpush1.bf16.msra.mxu0 0
          %537 = vmatprep.subr.bf16.mxu0 0
          %538 = vmatpush1.bf16.msra.mxu0 0
          %539 = vmatprep.subr.bf16.mxu0 0
          %540 = vmatpush1.bf16.msra.mxu0 0
          %541 = vmatprep.subr.bf16.mxu0 0
          %542 = vmatpush1.bf16.msra.mxu0 0
          %543 = vmatprep.subr.bf16.mxu0 0
          %544 = vmatpush1.bf16.msra.mxu0 0
          %545 = vmatprep.subr.bf16.mxu0 0
          %546 = vmatpush1.bf16.msra.mxu0 0
          %547 = vmatprep.subr.bf16.mxu0 0
          %548 = vmatpush1.bf16.msra.mxu0 0
          %549 = vmatprep.subr.bf16.mxu0 0
          %550 = vmatpush1.bf16.msra.mxu0 0
          %551 = vmatprep.subr.bf16.mxu0 0
          %552 = vmatpush1.bf16.msra.mxu0 0
          %553 = vmatprep.subr.bf16.mxu0 0
          %554 = vmatpush1.bf16.msra.mxu0 0
          %555 = vmatprep.subr.bf16.mxu0 0
          %556 = vmatpush1.bf16.msra.mxu0 0
          %557 = vmatprep.subr.bf16.mxu0 0
          %558 = vmatpush1.bf16.msra.mxu0 0
          %559 = vmatprep.subr.bf16.mxu0 0
          %560 = vmatpush1.bf16.msra.mxu0 0
          %561 = vmatprep.subr.bf16.mxu0 0
          %562 = vmatpush1.bf16.msra.mxu0 0
          %563 = vmatprep.mubr.bf16.mxu0 0
          %564 = vmatmul.mubr.bf16.gmra.mrb[0].mxu0 %v486
          %v565 = vpop.f32.mrb[0].mxu0
          %v566 = vadd.f32 %v430, %v565
          %v567 = vpop.f32.mrb[0].mxu0
          %v568 = vadd.f32 %v434, %v567
          %v569 = vpop.f32.mrb[0].mxu0
          %v570 = vadd.f32 %v430, %v569
          %v571 = vpop.f32.mrb[0].mxu0
          %v572 = vadd.f32 %v434, %v571
          %573 = vdwg.mxu0
          %v574 = vpack.c.bf16 %v527, %v523
          %v575 = vpack.c.bf16 %v529, %v525
          %v576 = vpack.c.bf16 %v570, %v566
          %v577 = vpack.c.bf16 %v572, %v568
          %578 = vst [vmem:[#allocation2] sm:$0xff] %v574
          %579 = vst [vmem:[#allocation2 + $0x8] sm:$0xff] %v575
          %580 = vst [vmem:[#allocation2 + $0x10] sm:$0xff] %v576
          %581 = vst [vmem:[#allocation2 + $0x18] sm:$0xff] %v577
        $region64: #{tpu_custom_call.1} parent=51 // pred_fallthru
          _
        %v582 = vld [vmem:[%s4] sm:$0xf]
        %v583 = vld [vmem:[%s4 + $0x4] sm:$0xf]
        %v584 = vld [vmem:[%s4 + $0x8] sm:$0xf]
        %v585 = vld [vmem:[%s4 + $0xc] sm:$0xf]
        %v586 = vld [vmem:[%s4 + $0x10] sm:$0xf]
        %v587 = vld [vmem:[%s4 + $0x14] sm:$0xf]
        %v588 = vld [vmem:[%s4 + $0x18] sm:$0xf]
        %v589 = vld [vmem:[%s4 + $0x1c] sm:$0xf]
        %v590 = vld [vmem:[%s4 + $0x20] sm:$0xf]
        %v591 = vld [vmem:[%s4 + $0x24] sm:$0xf]
        %v592 = vld [vmem:[%s4 + $0x28] sm:$0xf]
        %v593 = vld [vmem:[%s4 + $0x2c] sm:$0xf]
        %v594 = vld [vmem:[%s4 + $0x30] sm:$0xf]
        %v595 = vld [vmem:[%s4 + $0x34] sm:$0xf]
        %v596 = vld [vmem:[%s4 + $0x38] sm:$0xf]
        %v597 = vld [vmem:[%s4 + $0x3c] sm:$0xf]
        %v598 = vld [vmem:[%s4 + $0x40] sm:$0xf]
        %v599 = vld [vmem:[%s4 + $0x44] sm:$0xf]
        %v600 = vld [vmem:[%s4 + $0x48] sm:$0xf]
        %v601 = vld [vmem:[%s4 + $0x4c] sm:$0xf]
        %v602 = vld [vmem:[%s4 + $0x50] sm:$0xf]
        %v603 = vld [vmem:[%s4 + $0x54] sm:$0xf]
        %v604 = vld [vmem:[%s4 + $0x58] sm:$0xf]
        %v605 = vld [vmem:[%s4 + $0x5c] sm:$0xf]
        %v606 = vld [vmem:[%s4 + $0x60] sm:$0xf]
        %v607 = vld [vmem:[%s4 + $0x64] sm:$0xf]
        %v608 = vld [vmem:[%s4 + $0x68] sm:$0xf]
        %v609 = vld [vmem:[%s4 + $0x6c] sm:$0xf]
        %v610 = vld [vmem:[%s4 + $0x70] sm:$0xf]
        %v611 = vld [vmem:[%s4 + $0x74] sm:$0xf]
        %v612 = vld [vmem:[%s4 + $0x78] sm:$0xf]
        %v613 = vld [vmem:[%s4 + $0x7c] sm:$0xf]
        %v614 = vld [vmem:[%s4 + $0x80] sm:$0xf]
        %v615 = vld [vmem:[%s4 + $0x84] sm:$0xf]
        %v616 = vld [vmem:[%s4 + $0x88] sm:$0xf]
        %v617 = vld [vmem:[%s4 + $0x8c] sm:$0xf]
        %v618 = vld [vmem:[%s4 + $0x90] sm:$0xf]
        %v619 = vld [vmem:[%s4 + $0x94] sm:$0xf]
        %v620 = vld [vmem:[%s4 + $0x98] sm:$0xf]
        %v621 = vld [vmem:[%s4 + $0x9c] sm:$0xf]
        %v622 = vld [vmem:[%s4 + $0xa0] sm:$0xf]
        %v623 = vld [vmem:[%s4 + $0xa4] sm:$0xf]
        %v624 = vld [vmem:[%s4 + $0xa8] sm:$0xf]
        %v625 = vld [vmem:[%s4 + $0xac] sm:$0xf]
        %v626 = vld [vmem:[%s4 + $0xb0] sm:$0xf]
        %v627 = vld [vmem:[%s4 + $0xb4] sm:$0xf]
        %v628 = vld [vmem:[%s4 + $0xb8] sm:$0xf]
        %v629 = vld [vmem:[%s4 + $0xbc] sm:$0xf]
        %v630 = vld [vmem:[%s4 + $0xc0] sm:$0xf]
        %v631 = vld [vmem:[%s4 + $0xc4] sm:$0xf]
        %v632 = vld [vmem:[%s4 + $0xc8] sm:$0xf]
        %v633 = vld [vmem:[%s4 + $0xcc] sm:$0xf]
        %v634 = vld [vmem:[%s4 + $0xd0] sm:$0xf]
        %v635 = vld [vmem:[%s4 + $0xd4] sm:$0xf]
        %v636 = vld [vmem:[%s4 + $0xd8] sm:$0xf]
        %v637 = vld [vmem:[%s4 + $0xdc] sm:$0xf]
        %v638 = vld [vmem:[%s4 + $0xe0] sm:$0xf]
        %v639 = vld [vmem:[%s4 + $0xe4] sm:$0xf]
        %v640 = vld [vmem:[%s4 + $0xe8] sm:$0xf]
        %v641 = vld [vmem:[%s4 + $0xec] sm:$0xf]
        %v642 = vld [vmem:[%s4 + $0xf0] sm:$0xf]
        %v643 = vld [vmem:[%s4 + $0xf4] sm:$0xf]
        %v644 = vld [vmem:[%s4 + $0xf8] sm:$0xf]
        %v645 = vld [vmem:[%s4 + $0xfc] sm:$0xf]
        %v646 = vld [vmem:[%s400] sm:$0xf]
        %v647 = vld [vmem:[%s400 + $0x4] sm:$0xf]
        %v648 = vld [vmem:[%s400 + $0x8] sm:$0xf]
        %v649 = vld [vmem:[%s400 + $0xc] sm:$0xf]
        %v650 = vld [vmem:[%s5] sm:$0xff]
        %v651 = vld [vmem:[%s5 + $0x8] sm:$0xff]
        %v652 = vld [vmem:[%s5 + $0x10] sm:$0xff]
        %v653 = vld [vmem:[%s5 + $0x18] sm:$0xff]
        %v654 = vld [vmem:[%s5 + $0x20] sm:$0xff]
        %v655 = vld [vmem:[%s5 + $0x28] sm:$0xff]
        %v656 = vld [vmem:[%s5 + $0x30] sm:$0xff]
        %v657 = vld [vmem:[%s5 + $0x38] sm:$0xff]
        %v658 = vld [vmem:[%s5 + $0x40] sm:$0xff]
        %v659 = vld [vmem:[%s5 + $0x48] sm:$0xff]
        %v660 = vld [vmem:[%s5 + $0x50] sm:$0xff]
        %v661 = vld [vmem:[%s5 + $0x58] sm:$0xff]
        %v662 = vld [vmem:[%s5 + $0x60] sm:$0xff]
        %v663 = vld [vmem:[%s5 + $0x68] sm:$0xff]
        %v664 = vld [vmem:[%s5 + $0x70] sm:$0xff]
        %v665 = vld [vmem:[%s5 + $0x78] sm:$0xff]
        %v666 = vld [vmem:[%s5 + $0x80] sm:$0xff]
        %v667 = vld [vmem:[%s5 + $0x88] sm:$0xff]
        %v668 = vld [vmem:[%s5 + $0x90] sm:$0xff]
        %v669 = vld [vmem:[%s5 + $0x98] sm:$0xff]
        %v670 = vld [vmem:[%s5 + $0xa0] sm:$0xff]
        %v671 = vld [vmem:[%s5 + $0xa8] sm:$0xff]
        %v672 = vld [vmem:[%s5 + $0xb0] sm:$0xff]
        %v673 = vld [vmem:[%s5 + $0xb8] sm:$0xff]
        %v674 = vld [vmem:[%s5 + $0xc0] sm:$0xff]
        %v675 = vld [vmem:[%s5 + $0xc8] sm:$0xff]
        %v676 = vld [vmem:[%s5 + $0xd0] sm:$0xff]
        %v677 = vld [vmem:[%s5 + $0xd8] sm:$0xff]
        %v678 = vld [vmem:[%s5 + $0xe0] sm:$0xff]
        %v679 = vld [vmem:[%s5 + $0xe8] sm:$0xff]
        %v680 = vld [vmem:[%s5 + $0xf0] sm:$0xff]
        %v681 = vld [vmem:[%s5 + $0xf8] sm:$0xff]
        %v682 = vld [vmem:[%s5 + $0x100] sm:$0xff]
        %v683 = vld [vmem:[%s5 + $0x108] sm:$0xff]
        %v684 = vld [vmem:[%s5 + $0x110] sm:$0xff]
        %v685 = vld [vmem:[%s5 + $0x118] sm:$0xff]
        %v686 = vld [vmem:[%s5 + $0x120] sm:$0xff]
        %v687 = vld [vmem:[%s5 + $0x128] sm:$0xff]
        %v688 = vld [vmem:[%s5 + $0x130] sm:$0xff]
        %v689 = vld [vmem:[%s5 + $0x138] sm:$0xff]
        %v690 = vld [vmem:[%s5 + $0x140] sm:$0xff]
        %v691 = vld [vmem:[%s5 + $0x148] sm:$0xff]
        %v692 = vld [vmem:[%s5 + $0x150] sm:$0xff]
        %v693 = vld [vmem:[%s5 + $0x158] sm:$0xff]
        %v694 = vld [vmem:[%s5 + $0x160] sm:$0xff]
        %v695 = vld [vmem:[%s5 + $0x168] sm:$0xff]
        %v696 = vld [vmem:[%s5 + $0x170] sm:$0xff]
        %v697 = vld [vmem:[%s5 + $0x178] sm:$0xff]
        %v698 = vld [vmem:[%s5 + $0x180] sm:$0xff]
        %v699 = vld [vmem:[%s5 + $0x188] sm:$0xff]
        %v700 = vld [vmem:[%s5 + $0x190] sm:$0xff]
        %v701 = vld [vmem:[%s5 + $0x198] sm:$0xff]
        %v702 = vld [vmem:[%s5 + $0x1a0] sm:$0xff]
        %v703 = vld [vmem:[%s5 + $0x1a8] sm:$0xff]
        %v704 = vld [vmem:[%s5 + $0x1b0] sm:$0xff]
        %v705 = vld [vmem:[%s5 + $0x1b8] sm:$0xff]
        %v706 = vld [vmem:[%s5 + $0x1c0] sm:$0xff]
        %v707 = vld [vmem:[%s5 + $0x1c8] sm:$0xff]
        %v708 = vld [vmem:[%s5 + $0x1d0] sm:$0xff]
        %v709 = vld [vmem:[%s5 + $0x1d8] sm:$0xff]
        %v710 = vld [vmem:[%s5 + $0x1e0] sm:$0xff]
        %v711 = vld [vmem:[%s5 + $0x1e8] sm:$0xff]
        %v712 = vld [vmem:[%s5 + $0x1f0] sm:$0xff]
        %v713 = vld [vmem:[%s5 + $0x1f8] sm:$0xff]
        %715 = vset.pattern.permute.xlu0 0
        %716 = vperm.xlu0 %715, %v650
        %v717 = vpop.permute.xlu0 %716
        %720 = vset.pattern.permute.xlu0 0
        %721 = vperm.xlu0 %720, %v651
        %v722 = vpop.permute.xlu0 %721
        %725 = vset.pattern.permute.xlu0 0
        %726 = vperm.xlu0 %725, %v652
        %v727 = vpop.permute.xlu0 %726
        %730 = vset.pattern.permute.xlu0 0
        %731 = vperm.xlu0 %730, %v653
        %v732 = vpop.permute.xlu0 %731
        %735 = vset.pattern.permute.xlu0 0
        %736 = vperm.xlu0 %735, %v654
        %v737 = vpop.permute.xlu0 %736
        %740 = vset.pattern.permute.xlu0 0
        %741 = vperm.xlu0 %740, %v655
        %v742 = vpop.permute.xlu0 %741
        %745 = vset.pattern.permute.xlu0 0
        %746 = vperm.xlu0 %745, %v656
        %v747 = vpop.permute.xlu0 %746
        %750 = vset.pattern.permute.xlu0 0
        %751 = vperm.xlu0 %750, %v657
        %v752 = vpop.permute.xlu0 %751
        %755 = vset.pattern.permute.xlu0 0
        %756 = vperm.xlu0 %755, %v658
        %v757 = vpop.permute.xlu0 %756
        %760 = vset.pattern.permute.xlu0 0
        %761 = vperm.xlu0 %760, %v659
        %v762 = vpop.permute.xlu0 %761
        %765 = vset.pattern.permute.xlu0 0
        %766 = vperm.xlu0 %765, %v660
        %v767 = vpop.permute.xlu0 %766
        %770 = vset.pattern.permute.xlu0 0
        %771 = vperm.xlu0 %770, %v661
        %v772 = vpop.permute.xlu0 %771
        %775 = vset.pattern.permute.xlu0 0
        %776 = vperm.xlu0 %775, %v662
        %v777 = vpop.permute.xlu0 %776
        %780 = vset.pattern.permute.xlu0 0
        %781 = vperm.xlu0 %780, %v663
        %v782 = vpop.permute.xlu0 %781
        %785 = vset.pattern.permute.xlu0 0
        %786 = vperm.xlu0 %785, %v664
        %v787 = vpop.permute.xlu0 %786
        %790 = vset.pattern.permute.xlu0 0
        %791 = vperm.xlu0 %790, %v665
        %v792 = vpop.permute.xlu0 %791
        %795 = vset.pattern.permute.xlu0 0
        %796 = vperm.xlu0 %795, %v666
        %v797 = vpop.permute.xlu0 %796
        %800 = vset.pattern.permute.xlu0 0
        %801 = vperm.xlu0 %800, %v667
        %v802 = vpop.permute.xlu0 %801
        %805 = vset.pattern.permute.xlu0 0
        %806 = vperm.xlu0 %805, %v668
        %v807 = vpop.permute.xlu0 %806
        %810 = vset.pattern.permute.xlu0 0
        %811 = vperm.xlu0 %810, %v669
        %v812 = vpop.permute.xlu0 %811
        %815 = vset.pattern.permute.xlu0 0
        %816 = vperm.xlu0 %815, %v670
        %v817 = vpop.permute.xlu0 %816
        %820 = vset.pattern.permute.xlu0 0
        %821 = vperm.xlu0 %820, %v671
        %v822 = vpop.permute.xlu0 %821
        %825 = vset.pattern.permute.xlu0 0
        %826 = vperm.xlu0 %825, %v672
        %v827 = vpop.permute.xlu0 %826
        %830 = vset.pattern.permute.xlu0 0
        %831 = vperm.xlu0 %830, %v673
        %v832 = vpop.permute.xlu0 %831
        %835 = vset.pattern.permute.xlu0 0
        %836 = vperm.xlu0 %835, %v674
        %v837 = vpop.permute.xlu0 %836
        %840 = vset.pattern.permute.xlu0 0
        %841 = vperm.xlu0 %840, %v675
        %v842 = vpop.permute.xlu0 %841
        %845 = vset.pattern.permute.xlu0 0
        %846 = vperm.xlu0 %845, %v676
        %v847 = vpop.permute.xlu0 %846
        %850 = vset.pattern.permute.xlu0 0
        %851 = vperm.xlu0 %850, %v677
        %v852 = vpop.permute.xlu0 %851
        %855 = vset.pattern.permute.xlu0 0
        %856 = vperm.xlu0 %855, %v678
        %v857 = vpop.permute.xlu0 %856
        %860 = vset.pattern.permute.xlu0 0
        %861 = vperm.xlu0 %860, %v679
        %v862 = vpop.permute.xlu0 %861
        %865 = vset.pattern.permute.xlu0 0
        %866 = vperm.xlu0 %865, %v680
        %v867 = vpop.permute.xlu0 %866
        %870 = vset.pattern.permute.xlu0 0
        %871 = vperm.xlu0 %870, %v681
        %v872 = vpop.permute.xlu0 %871
        %875 = vset.pattern.permute.xlu0 0
        %876 = vperm.xlu0 %875, %v682
        %v877 = vpop.permute.xlu0 %876
        %880 = vset.pattern.permute.xlu0 0
        %881 = vperm.xlu0 %880, %v683
        %v882 = vpop.permute.xlu0 %881
        %885 = vset.pattern.permute.xlu0 0
        %886 = vperm.xlu0 %885, %v684
        %v887 = vpop.permute.xlu0 %886
        %890 = vset.pattern.permute.xlu0 0
        %891 = vperm.xlu0 %890, %v685
        %v892 = vpop.permute.xlu0 %891
        %895 = vset.pattern.permute.xlu0 0
        %896 = vperm.xlu0 %895, %v686
        %v897 = vpop.permute.xlu0 %896
        %900 = vset.pattern.permute.xlu0 0
        %901 = vperm.xlu0 %900, %v687
        %v902 = vpop.permute.xlu0 %901
        %905 = vset.pattern.permute.xlu0 0
        %906 = vperm.xlu0 %905, %v688
        %v907 = vpop.permute.xlu0 %906
        %910 = vset.pattern.permute.xlu0 0
        %911 = vperm.xlu0 %910, %v689
        %v912 = vpop.permute.xlu0 %911
        %915 = vset.pattern.permute.xlu0 0
        %916 = vperm.xlu0 %915, %v690
        %v917 = vpop.permute.xlu0 %916
        %920 = vset.pattern.permute.xlu0 0
        %921 = vperm.xlu0 %920, %v691
        %v922 = vpop.permute.xlu0 %921
        %925 = vset.pattern.permute.xlu0 0
        %926 = vperm.xlu0 %925, %v692
        %v927 = vpop.permute.xlu0 %926
        %930 = vset.pattern.permute.xlu0 0
        %931 = vperm.xlu0 %930, %v693
        %v932 = vpop.permute.xlu0 %931
        %935 = vset.pattern.permute.xlu0 0
        %936 = vperm.xlu0 %935, %v694
        %v937 = vpop.permute.xlu0 %936
        %940 = vset.pattern.permute.xlu0 0
        %941 = vperm.xlu0 %940, %v695
        %v942 = vpop.permute.xlu0 %941
        %945 = vset.pattern.permute.xlu0 0
        %946 = vperm.xlu0 %945, %v696
        %v947 = vpop.permute.xlu0 %946
        %950 = vset.pattern.permute.xlu0 0
        %951 = vperm.xlu0 %950, %v697
        %v952 = vpop.permute.xlu0 %951
        %955 = vset.pattern.permute.xlu0 0
        %956 = vperm.xlu0 %955, %v698
        %v957 = vpop.permute.xlu0 %956
        %960 = vset.pattern.permute.xlu0 0
        %961 = vperm.xlu0 %960, %v699
        %v962 = vpop.permute.xlu0 %961
        %965 = vset.pattern.permute.xlu0 0
        %966 = vperm.xlu0 %965, %v700
        %v967 = vpop.permute.xlu0 %966
        %970 = vset.pattern.permute.xlu0 0
        %971 = vperm.xlu0 %970, %v701
        %v972 = vpop.permute.xlu0 %971
        %975 = vset.pattern.permute.xlu0 0
        %976 = vperm.xlu0 %975, %v702
        %v977 = vpop.permute.xlu0 %976
        %980 = vset.pattern.permute.xlu0 0
        %981 = vperm.xlu0 %980, %v703
        %v982 = vpop.permute.xlu0 %981
        %985 = vset.pattern.permute.xlu0 0
        %986 = vperm.xlu0 %985, %v704
        %v987 = vpop.permute.xlu0 %986
        %990 = vset.pattern.permute.xlu0 0
        %991 = vperm.xlu0 %990, %v705
        %v992 = vpop.permute.xlu0 %991
        %995 = vset.pattern.permute.xlu0 0
        %996 = vperm.xlu0 %995, %v706
        %v997 = vpop.permute.xlu0 %996
        %1000 = vset.pattern.permute.xlu0 0
        %1001 = vperm.xlu0 %1000, %v707
        %v1002 = vpop.permute.xlu0 %1001
        %1005 = vset.pattern.permute.xlu0 0
        %1006 = vperm.xlu0 %1005, %v708
        %v1007 = vpop.permute.xlu0 %1006
        %1010 = vset.pattern.permute.xlu0 0
        %1011 = vperm.xlu0 %1010, %v709
        %v1012 = vpop.permute.xlu0 %1011
        %1015 = vset.pattern.permute.xlu0 0
        %1016 = vperm.xlu0 %1015, %v710
        %v1017 = vpop.permute.xlu0 %1016
        %1020 = vset.pattern.permute.xlu0 0
        %1021 = vperm.xlu0 %1020, %v711
        %v1022 = vpop.permute.xlu0 %1021
        %1025 = vset.pattern.permute.xlu0 0
        %1026 = vperm.xlu0 %1025, %v712
        %v1027 = vpop.permute.xlu0 %1026
        %1030 = vset.pattern.permute.xlu0 0
        %1031 = vperm.xlu0 %1030, %v713
        %v1032 = vpop.permute.xlu0 %1031
        %v1098 = vunpack.c.l.b16 %v582
        %v1099 = vunpack.c.l.b16 %v583
        %v1100 = vunpack.c.l.b16 %v584
        %v1101 = vunpack.c.l.b16 %v585
        %v1102 = vunpack.c.l.b16 %v586
        %v1103 = vunpack.c.l.b16 %v587
        %v1104 = vunpack.c.l.b16 %v588
        %v1105 = vunpack.c.l.b16 %v589
        %v1106 = vunpack.c.l.b16 %v590
        %v1107 = vunpack.c.l.b16 %v591
        %v1108 = vunpack.c.l.b16 %v592
        %v1109 = vunpack.c.l.b16 %v593
        %v1110 = vunpack.c.l.b16 %v594
        %v1111 = vunpack.c.l.b16 %v595
        %v1112 = vunpack.c.l.b16 %v596
        %v1113 = vunpack.c.l.b16 %v597
        %v1114 = vunpack.c.l.b16 %v598
        %v1115 = vunpack.c.l.b16 %v599
        %v1116 = vunpack.c.l.b16 %v600
        %v1117 = vunpack.c.l.b16 %v601
        %v1118 = vunpack.c.l.b16 %v602
        %v1119 = vunpack.c.l.b16 %v603
        %v1120 = vunpack.c.l.b16 %v604
        %v1121 = vunpack.c.l.b16 %v605
        %v1122 = vunpack.c.l.b16 %v606
        %v1123 = vunpack.c.l.b16 %v607
        %v1124 = vunpack.c.l.b16 %v608
        %v1125 = vunpack.c.l.b16 %v609
        %v1126 = vunpack.c.l.b16 %v610
        %v1127 = vunpack.c.l.b16 %v611
        %v1128 = vunpack.c.l.b16 %v612
        %v1129 = vunpack.c.l.b16 %v613
        %v1130 = vunpack.c.l.b16 %v614
        %v1131 = vunpack.c.l.b16 %v615
        %v1132 = vunpack.c.l.b16 %v616
        %v1133 = vunpack.c.l.b16 %v617
        %v1134 = vunpack.c.l.b16 %v618
        %v1135 = vunpack.c.l.b16 %v619
        %v1136 = vunpack.c.l.b16 %v620
        %v1137 = vunpack.c.l.b16 %v621
        %v1138 = vunpack.c.l.b16 %v622
        %v1139 = vunpack.c.l.b16 %v623
        %v1140 = vunpack.c.l.b16 %v624
        %v1141 = vunpack.c.l.b16 %v625
        %v1142 = vunpack.c.l.b16 %v626
        %v1143 = vunpack.c.l.b16 %v627
        %v1144 = vunpack.c.l.b16 %v628
        %v1145 = vunpack.c.l.b16 %v629
        %v1146 = vunpack.c.l.b16 %v630
        %v1147 = vunpack.c.l.b16 %v631
        %v1148 = vunpack.c.l.b16 %v632
        %v1149 = vunpack.c.l.b16 %v633
        %v1150 = vunpack.c.l.b16 %v634
        %v1151 = vunpack.c.l.b16 %v635
        %v1152 = vunpack.c.l.b16 %v636
        %v1153 = vunpack.c.l.b16 %v637
        %v1154 = vunpack.c.l.b16 %v638
        %v1155 = vunpack.c.l.b16 %v639
        %v1156 = vunpack.c.l.b16 %v640
        %v1157 = vunpack.c.l.b16 %v641
        %v1158 = vunpack.c.l.b16 %v642
        %v1159 = vunpack.c.l.b16 %v643
        %v1160 = vunpack.c.l.b16 %v644
        %v1161 = vunpack.c.l.b16 %v645
        %v1162 = vpack.c.b16 %v1099, %v1098
        %v1163 = vpack.c.b16 %v1101, %v1100
        %v1164 = vpack.c.b16 %v1103, %v1102
        %v1165 = vpack.c.b16 %v1105, %v1104
        %v1166 = vpack.c.b16 %v1107, %v1106
        %v1167 = vpack.c.b16 %v1109, %v1108
        %v1168 = vpack.c.b16 %v1111, %v1110
        %v1169 = vpack.c.b16 %v1113, %v1112
        %v1170 = vpack.c.b16 %v1115, %v1114
        %v1171 = vpack.c.b16 %v1117, %v1116
        %v1172 = vpack.c.b16 %v1119, %v1118
        %v1173 = vpack.c.b16 %v1121, %v1120
        %v1174 = vpack.c.b16 %v1123, %v1122
        %v1175 = vpack.c.b16 %v1125, %v1124
        %v1176 = vpack.c.b16 %v1127, %v1126
        %v1177 = vpack.c.b16 %v1129, %v1128
        %v1178 = vpack.c.b16 %v1131, %v1130
        %v1179 = vpack.c.b16 %v1133, %v1132
        %v1180 = vpack.c.b16 %v1135, %v1134
        %v1181 = vpack.c.b16 %v1137, %v1136
        %v1182 = vpack.c.b16 %v1139, %v1138
        %v1183 = vpack.c.b16 %v1141, %v1140
        %v1184 = vpack.c.b16 %v1143, %v1142
        %v1185 = vpack.c.b16 %v1145, %v1144
        %v1186 = vpack.c.b16 %v1147, %v1146
        %v1187 = vpack.c.b16 %v1149, %v1148
        %v1188 = vpack.c.b16 %v1151, %v1150
        %v1189 = vpack.c.b16 %v1153, %v1152
        %v1190 = vpack.c.b16 %v1155, %v1154
        %v1191 = vpack.c.b16 %v1157, %v1156
        %v1192 = vpack.c.b16 %v1159, %v1158
        %v1193 = vpack.c.b16 %v1161, %v1160
        %v1198 = vunpack.c.l.b16 %v646
        %v1199 = vunpack.c.l.b16 %v647
        %v1200 = vunpack.c.l.b16 %v648
        %v1201 = vunpack.c.l.b16 %v649
        %v1202 = vpack.c.b16 %v1199, %v1198
        %v1203 = vpack.c.b16 %v1201, %v1200
        %vm1206 = vcmask 261120
        %v1208 = vsel %vm1206, %v1162, 0
        %v1211 = vsel %vm1206, %v1163, 0
        %v1214 = vsel %vm1206, %v1164, 0
        %v1217 = vsel %vm1206, %v1165, 0
        %v1220 = vsel %vm1206, %v1166, 0
        %v1223 = vsel %vm1206, %v1167, 0
        %v1226 = vsel %vm1206, %v1168, 0
        %v1229 = vsel %vm1206, %v1169, 0
        %v1232 = vsel %vm1206, %v1170, 0
        %v1235 = vsel %vm1206, %v1171, 0
        %v1238 = vsel %vm1206, %v1172, 0
        %v1241 = vsel %vm1206, %v1173, 0
        %v1244 = vsel %vm1206, %v1174, 0
        %v1247 = vsel %vm1206, %v1175, 0
        %v1250 = vsel %vm1206, %v1176, 0
        %v1253 = vsel %vm1206, %v1177, 0
        %v1256 = vsel %vm1206, %v1178, 0
        %v1259 = vsel %vm1206, %v1179, 0
        %v1262 = vsel %vm1206, %v1180, 0
        %v1265 = vsel %vm1206, %v1181, 0
        %v1268 = vsel %vm1206, %v1182, 0
        %v1271 = vsel %vm1206, %v1183, 0
        %v1274 = vsel %vm1206, %v1184, 0
        %v1277 = vsel %vm1206, %v1185, 0
        %v1280 = vsel %vm1206, %v1186, 0
        %v1283 = vsel %vm1206, %v1187, 0
        %v1286 = vsel %vm1206, %v1188, 0
        %v1289 = vsel %vm1206, %v1189, 0
        %v1292 = vsel %vm1206, %v1190, 0
        %v1295 = vsel %vm1206, %v1191, 0
        %v1298 = vsel %vm1206, %v1192, 0
        %v1301 = vsel %vm1206, %v1193, 0
        %1303 = vmatprep.subr.bf16.mxu0 0
        %1304 = vmatpush1.bf16.msra.mxu0 %v1202
        %1305 = vmatprep.subr.bf16.mxu0 0
        %1306 = vmatpush1.bf16.msra.mxu0 %v1203
        %1307 = vmatprep.subr.bf16.mxu0 0
        %1308 = vmatpush1.bf16.msra.mxu0 0
        %1309 = vmatprep.subr.bf16.mxu0 0
        %1310 = vmatpush1.bf16.msra.mxu0 0
        %1311 = vmatprep.subr.bf16.mxu0 0
        %1312 = vmatpush1.bf16.msra.mxu0 0
        %1313 = vmatprep.subr.bf16.mxu0 0
        %1314 = vmatpush1.bf16.msra.mxu0 0
        %1315 = vmatprep.subr.bf16.mxu0 0
        %1316 = vmatpush1.bf16.msra.mxu0 0
        %1317 = vmatprep.subr.bf16.mxu0 0
        %1318 = vmatpush1.bf16.msra.mxu0 0
        %1319 = vmatprep.subr.bf16.mxu0 0
        %1320 = vmatpush1.bf16.msra.mxu0 0
        %1321 = vmatprep.subr.bf16.mxu0 0
        %1322 = vmatpush1.bf16.msra.mxu0 0
        %1323 = vmatprep.subr.bf16.mxu0 0
        %1324 = vmatpush1.bf16.msra.mxu0 0
        %1325 = vmatprep.subr.bf16.mxu0 0
        %1326 = vmatpush1.bf16.msra.mxu0 0
        %1327 = vmatprep.subr.bf16.mxu0 0
        %1328 = vmatpush1.bf16.msra.mxu0 0
        %1329 = vmatprep.subr.bf16.mxu0 0
        %1330 = vmatpush1.bf16.msra.mxu0 0
        %1331 = vmatprep.subr.bf16.mxu0 0
        %1332 = vmatpush1.bf16.msra.mxu0 0
        %1333 = vmatprep.subr.bf16.mxu0 0
        %1334 = vmatpush1.bf16.msra.mxu0 0
        %1335 = vmatprep.mubr.bf16.mxu0 0
        %1336 = vmatmul.mubr.bf16.gmra.mrb[0].mxu0 %v1208
        %v1337 = vpop.f32.mrb[0].mxu0
        %v1338 = vadd.f32 %v717, %v1337
        %v1339 = vpop.f32.mrb[0].mxu0
        %v1340 = vpop.f32.mrb[0].mxu0
        %v1341 = vadd.f32 %v722, %v1340
        %v1342 = vpop.f32.mrb[0].mxu0
        %1343 = vmatprep.mubr.bf16.mxu0 0
        %1344 = vmatmul.mubr.bf16.gmra.mrb[0].mxu0 %v1211
        %v1345 = vpop.f32.mrb[0].mxu0
        %v1346 = vadd.f32 %v727, %v1345
        %v1347 = vpop.f32.mrb[0].mxu0
        %v1348 = vpop.f32.mrb[0].mxu0
        %v1349 = vadd.f32 %v732, %v1348
        %v1350 = vpop.f32.mrb[0].mxu0
        %1351 = vmatprep.mubr.bf16.mxu0 0
        %1352 = vmatmul.mubr.bf16.gmra.mrb[0].mxu0 %v1214
        %v1353 = vpop.f32.mrb[0].mxu0
        %v1354 = vadd.f32 %v737, %v1353
        %v1355 = vpop.f32.mrb[0].mxu0
        %v1356 = vpop.f32.mrb[0].mxu0
        %v1357 = vadd.f32 %v742, %v1356
        %v1358 = vpop.f32.mrb[0].mxu0
        %1359 = vmatprep.mubr.bf16.mxu0 0
        %1360 = vmatmul.mubr.bf16.gmra.mrb[0].mxu0 %v1217
        %v1361 = vpop.f32.mrb[0].mxu0
        %v1362 = vadd.f32 %v747, %v1361
        %v1363 = vpop.f32.mrb[0].mxu0
        %v1364 = vpop.f32.mrb[0].mxu0
        %v1365 = vadd.f32 %v752, %v1364
        %v1366 = vpop.f32.mrb[0].mxu0
        %1367 = vmatprep.mubr.bf16.mxu0 0
        %1368 = vmatmul.mubr.bf16.gmra.mrb[0].mxu0 %v1220
        %v1369 = vpop.f32.mrb[0].mxu0
        %v1370 = vadd.f32 %v757, %v1369
        %v1371 = vpop.f32.mrb[0].mxu0
        %v1372 = vpop.f32.mrb[0].mxu0
        %v1373 = vadd.f32 %v762, %v1372
        %v1374 = vpop.f32.mrb[0].mxu0
        %1375 = vmatprep.mubr.bf16.mxu0 0
        %1376 = vmatmul.mubr.bf16.gmra.mrb[0].mxu0 %v1223
        %v1377 = vpop.f32.mrb[0].mxu0
        %v1378 = vadd.f32 %v767, %v1377
        %v1379 = vpop.f32.mrb[0].mxu0
        %v1380 = vpop.f32.mrb[0].mxu0
        %v1381 = vadd.f32 %v772, %v1380
        %v1382 = vpop.f32.mrb[0].mxu0
        %1383 = vmatprep.mubr.bf16.mxu0 0
        %1384 = vmatmul.mubr.bf16.gmra.mrb[0].mxu0 %v1226
        %v1385 = vpop.f32.mrb[0].mxu0
        %v1386 = vadd.f32 %v777, %v1385
        %v1387 = vpop.f32.mrb[0].mxu0
        %v1388 = vpop.f32.mrb[0].mxu0
        %v1389 = vadd.f32 %v782, %v1388
        %v1390 = vpop.f32.mrb[0].mxu0
        %1391 = vmatprep.mubr.bf16.mxu0 0
        %1392 = vmatmul.mubr.bf16.gmra.mrb[0].mxu0 %v1229
        %v1393 = vpop.f32.mrb[0].mxu0
        %v1394 = vadd.f32 %v787, %v1393
        %v1395 = vpop.f32.mrb[0].mxu0
        %v1396 = vpop.f32.mrb[0].mxu0
        %v1397 = vadd.f32 %v792, %v1396
        %v1398 = vpop.f32.mrb[0].mxu0
        %1399 = vmatprep.mubr.bf16.mxu0 0
        %1400 = vmatmul.mubr.bf16.gmra.mrb[0].mxu0 %v1232
        %v1401 = vpop.f32.mrb[0].mxu0
        %v1402 = vadd.f32 %v797, %v1401
        %v1403 = vpop.f32.mrb[0].mxu0
        %v1404 = vpop.f32.mrb[0].mxu0
        %v1405 = vadd.f32 %v802, %v1404
        %v1406 = vpop.f32.mrb[0].mxu0
        %1407 = vmatprep.mubr.bf16.mxu0 0
        %1408 = vmatmul.mubr.bf16.gmra.mrb[0].mxu0 %v1235
        %v1409 = vpop.f32.mrb[0].mxu0
        %v1410 = vadd.f32 %v807, %v1409
        %v1411 = vpop.f32.mrb[0].mxu0
        %v1412 = vpop.f32.mrb[0].mxu0
        %v1413 = vadd.f32 %v812, %v1412
        %v1414 = vpop.f32.mrb[0].mxu0
        %1415 = vmatprep.mubr.bf16.mxu0 0
        %1416 = vmatmul.mubr.bf16.gmra.mrb[0].mxu0 %v1238
        %v1417 = vpop.f32.mrb[0].mxu0
        %v1418 = vadd.f32 %v817, %v1417
        %v1419 = vpop.f32.mrb[0].mxu0
        %v1420 = vpop.f32.mrb[0].mxu0
        %v1421 = vadd.f32 %v822, %v1420
        %v1422 = vpop.f32.mrb[0].mxu0
        %1423 = vmatprep.mubr.bf16.mxu0 0
        %1424 = vmatmul.mubr.bf16.gmra.mrb[0].mxu0 %v1241
        %v1425 = vpop.f32.mrb[0].mxu0
        %v1426 = vadd.f32 %v827, %v1425
        %v1427 = vpop.f32.mrb[0].mxu0
        %v1428 = vpop.f32.mrb[0].mxu0
        %v1429 = vadd.f32 %v832, %v1428
        %v1430 = vpop.f32.mrb[0].mxu0
        %1431 = vmatprep.mubr.bf16.mxu0 0
        %1432 = vmatmul.mubr.bf16.gmra.mrb[0].mxu0 %v1244
        %v1433 = vpop.f32.mrb[0].mxu0
        %v1434 = vadd.f32 %v837, %v1433
        %v1435 = vpop.f32.mrb[0].mxu0
        %v1436 = vpop.f32.mrb[0].mxu0
        %v1437 = vadd.f32 %v842, %v1436
        %v1438 = vpop.f32.mrb[0].mxu0
        %1439 = vmatprep.mubr.bf16.mxu0 0
        %1440 = vmatmul.mubr.bf16.gmra.mrb[0].mxu0 %v1247
        %v1441 = vpop.f32.mrb[0].mxu0
        %v1442 = vadd.f32 %v847, %v1441
        %v1443 = vpop.f32.mrb[0].mxu0
        %v1444 = vpop.f32.mrb[0].mxu0
        %v1445 = vadd.f32 %v852, %v1444
        %v1446 = vpop.f32.mrb[0].mxu0
        %1447 = vmatprep.mubr.bf16.mxu0 0
        %1448 = vmatmul.mubr.bf16.gmra.mrb[0].mxu0 %v1250
        %v1449 = vpop.f32.mrb[0].mxu0
        %v1450 = vadd.f32 %v857, %v1449
        %v1451 = vpop.f32.mrb[0].mxu0
        %v1452 = vpop.f32.mrb[0].mxu0
        %v1453 = vadd.f32 %v862, %v1452
        %v1454 = vpop.f32.mrb[0].mxu0
        %1455 = vmatprep.mubr.bf16.mxu0 0
        %1456 = vmatmul.mubr.bf16.gmra.mrb[0].mxu0 %v1253
        %v1457 = vpop.f32.mrb[0].mxu0
        %v1458 = vadd.f32 %v867, %v1457
        %v1459 = vpop.f32.mrb[0].mxu0
        %v1460 = vpop.f32.mrb[0].mxu0
        %v1461 = vadd.f32 %v872, %v1460
        %v1462 = vpop.f32.mrb[0].mxu0
        %1463 = vmatprep.mubr.bf16.mxu0 0
        %1464 = vmatmul.mubr.bf16.gmra.mrb[0].mxu0 %v1256
        %v1465 = vpop.f32.mrb[0].mxu0
        %v1466 = vadd.f32 %v877, %v1465
        %v1467 = vpop.f32.mrb[0].mxu0
        %v1468 = vpop.f32.mrb[0].mxu0
        %v1469 = vadd.f32 %v882, %v1468
        %v1470 = vpop.f32.mrb[0].mxu0
        %1471 = vmatprep.mubr.bf16.mxu0 0
        %1472 = vmatmul.mubr.bf16.gmra.mrb[0].mxu0 %v1259
        %v1473 = vpop.f32.mrb[0].mxu0
        %v1474 = vadd.f32 %v887, %v1473
        %v1475 = vpop.f32.mrb[0].mxu0
        %v1476 = vpop.f32.mrb[0].mxu0
        %v1477 = vadd.f32 %v892, %v1476
        %v1478 = vpop.f32.mrb[0].mxu0
        %1479 = vmatprep.mubr.bf16.mxu0 0
        %1480 = vmatmul.mubr.bf16.gmra.mrb[0].mxu0 %v1262
        %v1481 = vpop.f32.mrb[0].mxu0
        %v1482 = vadd.f32 %v897, %v1481
        %v1483 = vpop.f32.mrb[0].mxu0
        %v1484 = vpop.f32.mrb[0].mxu0
        %v1485 = vadd.f32 %v902, %v1484
        %v1486 = vpop.f32.mrb[0].mxu0
        %1487 = vmatprep.mubr.bf16.mxu0 0
        %1488 = vmatmul.mubr.bf16.gmra.mrb[0].mxu0 %v1265
        %v1489 = vpop.f32.mrb[0].mxu0
        %v1490 = vadd.f32 %v907, %v1489
        %v1491 = vpop.f32.mrb[0].mxu0
        %v1492 = vpop.f32.mrb[0].mxu0
        %v1493 = vadd.f32 %v912, %v1492
        %v1494 = vpop.f32.mrb[0].mxu0
        %1495 = vmatprep.mubr.bf16.mxu0 0
        %1496 = vmatmul.mubr.bf16.gmra.mrb[0].mxu0 %v1268
        %v1497 = vpop.f32.mrb[0].mxu0
        %v1498 = vadd.f32 %v917, %v1497
        %v1499 = vpop.f32.mrb[0].mxu0
        %v1500 = vpop.f32.mrb[0].mxu0
        %v1501 = vadd.f32 %v922, %v1500
        %v1502 = vpop.f32.mrb[0].mxu0
        %1503 = vmatprep.mubr.bf16.mxu0 0
        %1504 = vmatmul.mubr.bf16.gmra.mrb[0].mxu0 %v1271
        %v1505 = vpop.f32.mrb[0].mxu0
        %v1506 = vadd.f32 %v927, %v1505
        %v1507 = vpop.f32.mrb[0].mxu0
        %v1508 = vpop.f32.mrb[0].mxu0
        %v1509 = vadd.f32 %v932, %v1508
        %v1510 = vpop.f32.mrb[0].mxu0
        %1511 = vmatprep.mubr.bf16.mxu0 0
        %1512 = vmatmul.mubr.bf16.gmra.mrb[0].mxu0 %v1274
        %v1513 = vpop.f32.mrb[0].mxu0
        %v1514 = vadd.f32 %v937, %v1513
        %v1515 = vpop.f32.mrb[0].mxu0
        %v1516 = vpop.f32.mrb[0].mxu0
        %v1517 = vadd.f32 %v942, %v1516
        %v1518 = vpop.f32.mrb[0].mxu0
        %1519 = vmatprep.mubr.bf16.mxu0 0
        %1520 = vmatmul.mubr.bf16.gmra.mrb[0].mxu0 %v1277
        %v1521 = vpop.f32.mrb[0].mxu0
        %v1522 = vadd.f32 %v947, %v1521
        %v1523 = vpop.f32.mrb[0].mxu0
        %v1524 = vpop.f32.mrb[0].mxu0
        %v1525 = vadd.f32 %v952, %v1524
        %v1526 = vpop.f32.mrb[0].mxu0
        %1527 = vmatprep.mubr.bf16.mxu0 0
        %1528 = vmatmul.mubr.bf16.gmra.mrb[0].mxu0 %v1280
        %v1529 = vpop.f32.mrb[0].mxu0
        %v1530 = vadd.f32 %v957, %v1529
        %v1531 = vpop.f32.mrb[0].mxu0
        %v1532 = vpop.f32.mrb[0].mxu0
        %v1533 = vadd.f32 %v962, %v1532
        %v1534 = vpop.f32.mrb[0].mxu0
        %1535 = vmatprep.mubr.bf16.mxu0 0
        %1536 = vmatmul.mubr.bf16.gmra.mrb[0].mxu0 %v1283
        %v1537 = vpop.f32.mrb[0].mxu0
        %v1538 = vadd.f32 %v967, %v1537
        %v1539 = vpop.f32.mrb[0].mxu0
        %v1540 = vpop.f32.mrb[0].mxu0
        %v1541 = vadd.f32 %v972, %v1540
        %v1542 = vpop.f32.mrb[0].mxu0
        %1543 = vmatprep.mubr.bf16.mxu0 0
        %1544 = vmatmul.mubr.bf16.gmra.mrb[0].mxu0 %v1286
        %v1545 = vpop.f32.mrb[0].mxu0
        %v1546 = vadd.f32 %v977, %v1545
        %v1547 = vpop.f32.mrb[0].mxu0
        %v1548 = vpop.f32.mrb[0].mxu0
        %v1549 = vadd.f32 %v982, %v1548
        %v1550 = vpop.f32.mrb[0].mxu0
        %1551 = vmatprep.mubr.bf16.mxu0 0
        %1552 = vmatmul.mubr.bf16.gmra.mrb[0].mxu0 %v1289
        %v1553 = vpop.f32.mrb[0].mxu0
        %v1554 = vadd.f32 %v987, %v1553
        %v1555 = vpop.f32.mrb[0].mxu0
        %v1556 = vpop.f32.mrb[0].mxu0
        %v1557 = vadd.f32 %v992, %v1556
        %v1558 = vpop.f32.mrb[0].mxu0
        %1559 = vmatprep.mubr.bf16.mxu0 0
        %1560 = vmatmul.mubr.bf16.gmra.mrb[0].mxu0 %v1292
        %v1561 = vpop.f32.mrb[0].mxu0
        %v1562 = vadd.f32 %v997, %v1561
        %v1563 = vpop.f32.mrb[0].mxu0
        %v1564 = vpop.f32.mrb[0].mxu0
        %v1565 = vadd.f32 %v1002, %v1564
        %v1566 = vpop.f32.mrb[0].mxu0
        %1567 = vmatprep.mubr.bf16.mxu0 0
        %1568 = vmatmul.mubr.bf16.gmra.mrb[0].mxu0 %v1295
        %v1569 = vpop.f32.mrb[0].mxu0
        %v1570 = vadd.f32 %v1007, %v1569
        %v1571 = vpop.f32.mrb[0].mxu0
        %v1572 = vpop.f32.mrb[0].mxu0
        %v1573 = vadd.f32 %v1012, %v1572
        %v1574 = vpop.f32.mrb[0].mxu0
        %1575 = vmatprep.mubr.bf16.mxu0 0
        %1576 = vmatmul.mubr.bf16.gmra.mrb[0].mxu0 %v1298
        %v1577 = vpop.f32.mrb[0].mxu0
        %v1578 = vadd.f32 %v1017, %v1577
        %v1579 = vpop.f32.mrb[0].mxu0
        %v1580 = vpop.f32.mrb[0].mxu0
        %v1581 = vadd.f32 %v1022, %v1580
        %v1582 = vpop.f32.mrb[0].mxu0
        %1583 = vmatprep.mubr.bf16.mxu0 0
        %1584 = vmatmul.mubr.bf16.gmra.mrb[0].mxu0 %v1301
        %v1585 = vpop.f32.mrb[0].mxu0
        %v1586 = vadd.f32 %v1027, %v1585
        %v1587 = vpop.f32.mrb[0].mxu0
        %v1588 = vpop.f32.mrb[0].mxu0
        %v1589 = vadd.f32 %v1032, %v1588
        %v1590 = vpop.f32.mrb[0].mxu0
        %1591 = vdwg.mxu0
        %v1592 = vpack.c.bf16 %v1341, %v1338
        %v1593 = vpack.c.bf16 %v1349, %v1346
        %v1594 = vpack.c.bf16 %v1357, %v1354
        %v1595 = vpack.c.bf16 %v1365, %v1362
        %v1596 = vpack.c.bf16 %v1373, %v1370
        %v1597 = vpack.c.bf16 %v1381, %v1378
        %v1598 = vpack.c.bf16 %v1389, %v1386
        %v1599 = vpack.c.bf16 %v1397, %v1394
        %v1600 = vpack.c.bf16 %v1405, %v1402
        %v1601 = vpack.c.bf16 %v1413, %v1410
        %v1602 = vpack.c.bf16 %v1421, %v1418
        %v1603 = vpack.c.bf16 %v1429, %v1426
        %v1604 = vpack.c.bf16 %v1437, %v1434
        %v1605 = vpack.c.bf16 %v1445, %v1442
        %v1606 = vpack.c.bf16 %v1453, %v1450
        %v1607 = vpack.c.bf16 %v1461, %v1458
        %v1608 = vpack.c.bf16 %v1469, %v1466
        %v1609 = vpack.c.bf16 %v1477, %v1474
        %v1610 = vpack.c.bf16 %v1485, %v1482
        %v1611 = vpack.c.bf16 %v1493, %v1490
        %v1612 = vpack.c.bf16 %v1501, %v1498
        %v1613 = vpack.c.bf16 %v1509, %v1506
        %v1614 = vpack.c.bf16 %v1517, %v1514
        %v1615 = vpack.c.bf16 %v1525, %v1522
        %v1616 = vpack.c.bf16 %v1533, %v1530
        %v1617 = vpack.c.bf16 %v1541, %v1538
        %v1618 = vpack.c.bf16 %v1549, %v1546
        %v1619 = vpack.c.bf16 %v1557, %v1554
        %v1620 = vpack.c.bf16 %v1565, %v1562
        %v1621 = vpack.c.bf16 %v1573, %v1570
        %v1622 = vpack.c.bf16 %v1581, %v1578
        %v1623 = vpack.c.bf16 %v1589, %v1586
        %1624 = vst [vmem:[#allocation3] sm:$0xff] %v1592
        %1625 = vst [vmem:[#allocation3 + $0x8] sm:$0xff] %v1593
        %1626 = vst [vmem:[#allocation3 + $0x10] sm:$0xff] %v1594
        %1627 = vst [vmem:[#allocation3 + $0x18] sm:$0xff] %v1595
        %1628 = vst [vmem:[#allocation3 + $0x20] sm:$0xff] %v1596
        %1629 = vst [vmem:[#allocation3 + $0x28] sm:$0xff] %v1597
        %1630 = vst [vmem:[#allocation3 + $0x30] sm:$0xff] %v1598
        %1631 = vst [vmem:[#allocation3 + $0x38] sm:$0xff] %v1599
        %1632 = vst [vmem:[#allocation3 + $0x40] sm:$0xff] %v1600
        %1633 = vst [vmem:[#allocation3 + $0x48] sm:$0xff] %v1601
        %1634 = vst [vmem:[#allocation3 + $0x50] sm:$0xff] %v1602
        %1635 = vst [vmem:[#allocation3 + $0x58] sm:$0xff] %v1603
        %1636 = vst [vmem:[#allocation3 + $0x60] sm:$0xff] %v1604
        %1637 = vst [vmem:[#allocation3 + $0x68] sm:$0xff] %v1605
        %1638 = vst [vmem:[#allocation3 + $0x70] sm:$0xff] %v1606
        %1639 = vst [vmem:[#allocation3 + $0x78] sm:$0xff] %v1607
        %1640 = vst [vmem:[#allocation3 + $0x80] sm:$0xff] %v1608
        %1641 = vst [vmem:[#allocation3 + $0x88] sm:$0xff] %v1609
        %1642 = vst [vmem:[#allocation3 + $0x90] sm:$0xff] %v1610
        %1643 = vst [vmem:[#allocation3 + $0x98] sm:$0xff] %v1611
        %1644 = vst [vmem:[#allocation3 + $0xa0] sm:$0xff] %v1612
        %1645 = vst [vmem:[#allocation3 + $0xa8] sm:$0xff] %v1613
        %1646 = vst [vmem:[#allocation3 + $0xb0] sm:$0xff] %v1614
        %1647 = vst [vmem:[#allocation3 + $0xb8] sm:$0xff] %v1615
        %1648 = vst [vmem:[#allocation3 + $0xc0] sm:$0xff] %v1616
        %1649 = vst [vmem:[#allocation3 + $0xc8] sm:$0xff] %v1617
        %1650 = vst [vmem:[#allocation3 + $0xd0] sm:$0xff] %v1618
        %1651 = vst [vmem:[#allocation3 + $0xd8] sm:$0xff] %v1619
        %1652 = vst [vmem:[#allocation3 + $0xe0] sm:$0xff] %v1620
        %1653 = vst [vmem:[#allocation3 + $0xe8] sm:$0xff] %v1621
        %1654 = vst [vmem:[#allocation3 + $0xf0] sm:$0xff] %v1622
        %1655 = vst [vmem:[#allocation3 + $0xf8] sm:$0xff] %v1623
        %v1656 = vld [vmem:[#allocation2] sm:$0xff]
        %v1657 = vld [vmem:[#allocation3] sm:$0xff]
        %v1658 = vld [vmem:[#allocation3 + $0x8] sm:$0xff]
        %v1659 = vld [vmem:[#allocation3 + $0x10] sm:$0xff]
        %v1660 = vld [vmem:[#allocation3 + $0x18] sm:$0xff]
        %v1661 = vld [vmem:[#allocation3 + $0x20] sm:$0xff]
        %v1662 = vld [vmem:[#allocation3 + $0x28] sm:$0xff]
        %v1663 = vld [vmem:[#allocation3 + $0x30] sm:$0xff]
        %v1664 = vld [vmem:[#allocation3 + $0x38] sm:$0xff]
        %1665 = vmatprep.subr.bf16.mxu0 0
        %1666 = vmatpush1.bf16.msra.mxu0 %v1657
        %1667 = vmatprep.subr.bf16.mxu0 0
        %1668 = vmatpush1.bf16.msra.mxu0 %v1658
        %1669 = vmatprep.subr.bf16.mxu0 0
        %1670 = vmatpush1.bf16.msra.mxu0 %v1659
        %1671 = vmatprep.subr.bf16.mxu0 0
        %1672 = vmatpush1.bf16.msra.mxu0 %v1660
        %1673 = vmatprep.subr.bf16.mxu0 0
        %1674 = vmatpush1.bf16.msra.mxu0 %v1661
        %1675 = vmatprep.subr.bf16.mxu0 0
        %1676 = vmatpush1.bf16.msra.mxu0 %v1662
        %1677 = vmatprep.subr.bf16.mxu0 0
        %1678 = vmatpush1.bf16.msra.mxu0 %v1663
        %1679 = vmatprep.subr.bf16.mxu0 0
        %1680 = vmatpush1.bf16.msra.mxu0 %v1664
        %1681 = vmatprep.subr.bf16.mxu0 0
        %1682 = vmatpush1.bf16.msra.mxu0 0
        %1683 = vmatprep.subr.bf16.mxu0 0
        %1684 = vmatpush1.bf16.msra.mxu0 0
        %1685 = vmatprep.subr.bf16.mxu0 0
        %1686 = vmatpush1.bf16.msra.mxu0 0
        %1687 = vmatprep.subr.bf16.mxu0 0
        %1688 = vmatpush1.bf16.msra.mxu0 0
        %1689 = vmatprep.subr.bf16.mxu0 0
        %1690 = vmatpush1.bf16.msra.mxu0 0
        %1691 = vmatprep.subr.bf16.mxu0 0
        %1692 = vmatpush1.bf16.msra.mxu0 0
        %1693 = vmatprep.subr.bf16.mxu0 0
        %1694 = vmatpush1.bf16.msra.mxu0 0
        %1695 = vmatprep.subr.bf16.mxu0 0
        %1696 = vmatpush1.bf16.msra.mxu0 0
        %1697 = vmatprep.mubr.bf16.mxu0 0
        %1698 = vmatmul.mubr.bf16.gmra.mrb[0].mxu0 %v1656
        %v1699 = vpop.f32.mrb[0].mxu0
        %v1700 = vadd.f32 0.0, %v1699
        %v1701 = vpop.f32.mrb[0].mxu0
        %v1702 = vpop.f32.mrb[0].mxu0
        %v1703 = vadd.f32 0.0, %v1702
        %v1704 = vpop.f32.mrb[0].mxu0
        %1705 = vdwg.mxu0
        %s1706 = sld [smem:[#allocation4]]
        %v1707 = vstv %s1706
        %v1708 = vmul.f32 %v1707, %v1700
        %v1709 = vmul.f32 %v1707, %v1703
        %s1710 = sld [smem:[#allocation7]]
        %v1711 = vstv %s1710
        %v1712 = vadd.f32 %v1708, %v1711
        %v1713 = vadd.f32 %v1709, %v1711
        %s1714 = sld [smem:[#allocation4 + $0x80]]
        %v1715 = vstv %s1714
        %v1716 = vmul.f32 %v1715, %v1700
        %v1717 = vmul.f32 %v1715, %v1703
        %s1718 = sld [smem:[#allocation7 + $0x1]]
        %v1719 = vstv %s1718
        %v1720 = vadd.f32 %v1716, %v1719
        %v1721 = vadd.f32 %v1717, %v1719
        %s1722 = sld [smem:[#allocation4 + $0x100]]
        %v1723 = vstv %s1722
        %v1724 = vmul.f32 %v1723, %v1700
        %v1725 = vmul.f32 %v1723, %v1703
        %s1726 = sld [smem:[#allocation7 + $0x2]]
        %v1727 = vstv %s1726
        %v1728 = vadd.f32 %v1724, %v1727
        %v1729 = vadd.f32 %v1725, %v1727
        %s1730 = sld [smem:[#allocation4 + $0x180]]
        %v1731 = vstv %s1730
        %v1732 = vmul.f32 %v1731, %v1700
        %v1733 = vmul.f32 %v1731, %v1703
        %s1734 = sld [smem:[#allocation7 + $0x3]]
        %v1735 = vstv %s1734
        %v1736 = vadd.f32 %v1732, %v1735
        %v1737 = vadd.f32 %v1733, %v1735
        %v1738 = vld [vmem:[#allocation2 + $0x8] sm:$0xff]
        %v1739 = vld [vmem:[#allocation3 + $0x40] sm:$0xff]
        %v1740 = vld [vmem:[#allocation3 + $0x48] sm:$0xff]
        %v1741 = vld [vmem:[#allocation3 + $0x50] sm:$0xff]
        %v1742 = vld [vmem:[#allocation3 + $0x58] sm:$0xff]
        %v1743 = vld [vmem:[#allocation3 + $0x60] sm:$0xff]
        %v1744 = vld [vmem:[#allocation3 + $0x68] sm:$0xff]
        %v1745 = vld [vmem:[#allocation3 + $0x70] sm:$0xff]
        %v1746 = vld [vmem:[#allocation3 + $0x78] sm:$0xff]
        %1747 = vmatprep.subr.bf16.mxu0 0
        %1748 = vmatpush1.bf16.msra.mxu0 %v1739
        %1749 = vmatprep.subr.bf16.mxu0 0
        %1750 = vmatpush1.bf16.msra.mxu0 %v1740
        %1751 = vmatprep.subr.bf16.mxu0 0
        %1752 = vmatpush1.bf16.msra.mxu0 %v1741
        %1753 = vmatprep.subr.bf16.mxu0 0
        %1754 = vmatpush1.bf16.msra.mxu0 %v1742
        %1755 = vmatprep.subr.bf16.mxu0 0
        %1756 = vmatpush1.bf16.msra.mxu0 %v1743
        %1757 = vmatprep.subr.bf16.mxu0 0
        %1758 = vmatpush1.bf16.msra.mxu0 %v1744
        %1759 = vmatprep.subr.bf16.mxu0 0
        %1760 = vmatpush1.bf16.msra.mxu0 %v1745
        %1761 = vmatprep.subr.bf16.mxu0 0
        %1762 = vmatpush1.bf16.msra.mxu0 %v1746
        %1763 = vmatprep.subr.bf16.mxu0 0
        %1764 = vmatpush1.bf16.msra.mxu0 0
        %1765 = vmatprep.subr.bf16.mxu0 0
        %1766 = vmatpush1.bf16.msra.mxu0 0
        %1767 = vmatprep.subr.bf16.mxu0 0
        %1768 = vmatpush1.bf16.msra.mxu0 0
        %1769 = vmatprep.subr.bf16.mxu0 0
        %1770 = vmatpush1.bf16.msra.mxu0 0
        %1771 = vmatprep.subr.bf16.mxu0 0
        %1772 = vmatpush1.bf16.msra.mxu0 0
        %1773 = vmatprep.subr.bf16.mxu0 0
        %1774 = vmatpush1.bf16.msra.mxu0 0
        %1775 = vmatprep.subr.bf16.mxu0 0
        %1776 = vmatpush1.bf16.msra.mxu0 0
        %1777 = vmatprep.subr.bf16.mxu0 0
        %1778 = vmatpush1.bf16.msra.mxu0 0
        %1779 = vmatprep.mubr.bf16.mxu0 0
        %1780 = vmatmul.mubr.bf16.gmra.mrb[0].mxu0 %v1738
        %v1781 = vpop.f32.mrb[0].mxu0
        %v1782 = vadd.f32 0.0, %v1781
        %v1783 = vpop.f32.mrb[0].mxu0
        %v1784 = vpop.f32.mrb[0].mxu0
        %v1785 = vadd.f32 0.0, %v1784
        %v1786 = vpop.f32.mrb[0].mxu0
        %1787 = vdwg.mxu0
        %s1788 = sld [smem:[#allocation4 + $0x1]]
        %v1789 = vstv %s1788
        %v1790 = vmul.f32 %v1789, %v1782
        %v1791 = vmul.f32 %v1789, %v1785
        %v1792 = vadd.f32 %v1712, %v1790
        %v1793 = vadd.f32 %v1713, %v1791
        %s1794 = sld [smem:[#allocation4 + $0x81]]
        %v1795 = vstv %s1794
        %v1796 = vmul.f32 %v1795, %v1782
        %v1797 = vmul.f32 %v1795, %v1785
        %v1798 = vadd.f32 %v1720, %v1796
        %v1799 = vadd.f32 %v1721, %v1797
        %s1800 = sld [smem:[#allocation4 + $0x101]]
        %v1801 = vstv %s1800
        %v1802 = vmul.f32 %v1801, %v1782
        %v1803 = vmul.f32 %v1801, %v1785
        %v1804 = vadd.f32 %v1728, %v1802
        %v1805 = vadd.f32 %v1729, %v1803
        %s1806 = sld [smem:[#allocation4 + $0x181]]
        %v1807 = vstv %s1806
        %v1808 = vmul.f32 %v1807, %v1782
        %v1809 = vmul.f32 %v1807, %v1785
        %v1810 = vadd.f32 %v1736, %v1808
        %v1811 = vadd.f32 %v1737, %v1809
        %v1812 = vld [vmem:[#allocation2 + $0x10] sm:$0xff]
        %v1813 = vld [vmem:[#allocation3 + $0x80] sm:$0xff]
        %v1814 = vld [vmem:[#allocation3 + $0x88] sm:$0xff]
        %v1815 = vld [vmem:[#allocation3 + $0x90] sm:$0xff]
        %v1816 = vld [vmem:[#allocation3 + $0x98] sm:$0xff]
        %v1817 = vld [vmem:[#allocation3 + $0xa0] sm:$0xff]
        %v1818 = vld [vmem:[#allocation3 + $0xa8] sm:$0xff]
        %v1819 = vld [vmem:[#allocation3 + $0xb0] sm:$0xff]
        %v1820 = vld [vmem:[#allocation3 + $0xb8] sm:$0xff]
        %1821 = vmatprep.subr.bf16.mxu0 0
        %1822 = vmatpush1.bf16.msra.mxu0 %v1813
        %1823 = vmatprep.subr.bf16.mxu0 0
        %1824 = vmatpush1.bf16.msra.mxu0 %v1814
        %1825 = vmatprep.subr.bf16.mxu0 0
        %1826 = vmatpush1.bf16.msra.mxu0 %v1815
        %1827 = vmatprep.subr.bf16.mxu0 0
        %1828 = vmatpush1.bf16.msra.mxu0 %v1816
        %1829 = vmatprep.subr.bf16.mxu0 0
        %1830 = vmatpush1.bf16.msra.mxu0 %v1817
        %1831 = vmatprep.subr.bf16.mxu0 0
        %1832 = vmatpush1.bf16.msra.mxu0 %v1818
        %1833 = vmatprep.subr.bf16.mxu0 0
        %1834 = vmatpush1.bf16.msra.mxu0 %v1819
        %1835 = vmatprep.subr.bf16.mxu0 0
        %1836 = vmatpush1.bf16.msra.mxu0 %v1820
        %1837 = vmatprep.subr.bf16.mxu0 0
        %1838 = vmatpush1.bf16.msra.mxu0 0
        %1839 = vmatprep.subr.bf16.mxu0 0
        %1840 = vmatpush1.bf16.msra.mxu0 0
        %1841 = vmatprep.subr.bf16.mxu0 0
        %1842 = vmatpush1.bf16.msra.mxu0 0
        %1843 = vmatprep.subr.bf16.mxu0 0
        %1844 = vmatpush1.bf16.msra.mxu0 0
        %1845 = vmatprep.subr.bf16.mxu0 0
        %1846 = vmatpush1.bf16.msra.mxu0 0
        %1847 = vmatprep.subr.bf16.mxu0 0
        %1848 = vmatpush1.bf16.msra.mxu0 0
        %1849 = vmatprep.subr.bf16.mxu0 0
        %1850 = vmatpush1.bf16.msra.mxu0 0
        %1851 = vmatprep.subr.bf16.mxu0 0
        %1852 = vmatpush1.bf16.msra.mxu0 0
        %1853 = vmatprep.mubr.bf16.mxu0 0
        %1854 = vmatmul.mubr.bf16.gmra.mrb[0].mxu0 %v1812
        %v1855 = vpop.f32.mrb[0].mxu0
        %v1856 = vadd.f32 0.0, %v1855
        %v1857 = vpop.f32.mrb[0].mxu0
        %v1858 = vpop.f32.mrb[0].mxu0
        %v1859 = vadd.f32 0.0, %v1858
        %v1860 = vpop.f32.mrb[0].mxu0
        %1861 = vdwg.mxu0
        %s1862 = sld [smem:[#allocation4 + $0x2]]
        %v1863 = vstv %s1862
        %v1864 = vmul.f32 %v1863, %v1856
        %v1865 = vmul.f32 %v1863, %v1859
        %v1866 = vadd.f32 %v1792, %v1864
        %v1867 = vadd.f32 %v1793, %v1865
        %s1868 = sld [smem:[#allocation4 + $0x82]]
        %v1869 = vstv %s1868
        %v1870 = vmul.f32 %v1869, %v1856
        %v1871 = vmul.f32 %v1869, %v1859
        %v1872 = vadd.f32 %v1798, %v1870
        %v1873 = vadd.f32 %v1799, %v1871
        %s1874 = sld [smem:[#allocation4 + $0x102]]
        %v1875 = vstv %s1874
        %v1876 = vmul.f32 %v1875, %v1856
        %v1877 = vmul.f32 %v1875, %v1859
        %v1878 = vadd.f32 %v1804, %v1876
        %v1879 = vadd.f32 %v1805, %v1877
        %s1880 = sld [smem:[#allocation4 + $0x182]]
        %v1881 = vstv %s1880
        %v1882 = vmul.f32 %v1881, %v1856
        %v1883 = vmul.f32 %v1881, %v1859
        %v1884 = vadd.f32 %v1810, %v1882
        %v1885 = vadd.f32 %v1811, %v1883
        %v1886 = vld [vmem:[#allocation2 + $0x18] sm:$0xff]
        %v1887 = vld [vmem:[#allocation3 + $0xc0] sm:$0xff]
        %v1888 = vld [vmem:[#allocation3 + $0xc8] sm:$0xff]
        %v1889 = vld [vmem:[#allocation3 + $0xd0] sm:$0xff]
        %v1890 = vld [vmem:[#allocation3 + $0xd8] sm:$0xff]
        %v1891 = vld [vmem:[#allocation3 + $0xe0] sm:$0xff]
        %v1892 = vld [vmem:[#allocation3 + $0xe8] sm:$0xff]
        %v1893 = vld [vmem:[#allocation3 + $0xf0] sm:$0xff]
        %v1894 = vld [vmem:[#allocation3 + $0xf8] sm:$0xff]
        %1895 = vmatprep.subr.bf16.mxu0 0
        %1896 = vmatpush1.bf16.msra.mxu0 %v1887
        %1897 = vmatprep.subr.bf16.mxu0 0
        %1898 = vmatpush1.bf16.msra.mxu0 %v1888
        %1899 = vmatprep.subr.bf16.mxu0 0
        %1900 = vmatpush1.bf16.msra.mxu0 %v1889
        %1901 = vmatprep.subr.bf16.mxu0 0
        %1902 = vmatpush1.bf16.msra.mxu0 %v1890
        %1903 = vmatprep.subr.bf16.mxu0 0
        %1904 = vmatpush1.bf16.msra.mxu0 %v1891
        %1905 = vmatprep.subr.bf16.mxu0 0
        %1906 = vmatpush1.bf16.msra.mxu0 %v1892
        %1907 = vmatprep.subr.bf16.mxu0 0
        %1908 = vmatpush1.bf16.msra.mxu0 %v1893
        %1909 = vmatprep.subr.bf16.mxu0 0
        %1910 = vmatpush1.bf16.msra.mxu0 %v1894
        %1911 = vmatprep.subr.bf16.mxu0 0
        %1912 = vmatpush1.bf16.msra.mxu0 0
        %1913 = vmatprep.subr.bf16.mxu0 0
        %1914 = vmatpush1.bf16.msra.mxu0 0
        %1915 = vmatprep.subr.bf16.mxu0 0
        %1916 = vmatpush1.bf16.msra.mxu0 0
        %1917 = vmatprep.subr.bf16.mxu0 0
        %1918 = vmatpush1.bf16.msra.mxu0 0
        %1919 = vmatprep.subr.bf16.mxu0 0
        %1920 = vmatpush1.bf16.msra.mxu0 0
        %1921 = vmatprep.subr.bf16.mxu0 0
        %1922 = vmatpush1.bf16.msra.mxu0 0
        %1923 = vmatprep.subr.bf16.mxu0 0
        %1924 = vmatpush1.bf16.msra.mxu0 0
        %1925 = vmatprep.subr.bf16.mxu0 0
        %1926 = vmatpush1.bf16.msra.mxu0 0
        %1927 = vmatprep.mubr.bf16.mxu0 0
        %1928 = vmatmul.mubr.bf16.gmra.mrb[0].mxu0 %v1886
        %v1929 = vpop.f32.mrb[0].mxu0
        %v1930 = vadd.f32 0.0, %v1929
        %v1931 = vpop.f32.mrb[0].mxu0
        %v1932 = vpop.f32.mrb[0].mxu0
        %v1933 = vadd.f32 0.0, %v1932
        %v1934 = vpop.f32.mrb[0].mxu0
        %1935 = vdwg.mxu0
        %s1936 = sld [smem:[#allocation4 + $0x3]]
        %v1937 = vstv %s1936
        %v1938 = vmul.f32 %v1937, %v1930
        %v1939 = vmul.f32 %v1937, %v1933
        %v1940 = vadd.f32 %v1866, %v1938
        %v1941 = vadd.f32 %v1867, %v1939
        %s1942 = sld [smem:[#allocation4 + $0x83]]
        %v1943 = vstv %s1942
        %v1944 = vmul.f32 %v1943, %v1930
        %v1945 = vmul.f32 %v1943, %v1933
        %v1946 = vadd.f32 %v1872, %v1944
        %v1947 = vadd.f32 %v1873, %v1945
        %s1948 = sld [smem:[#allocation4 + $0x103]]
        %v1949 = vstv %s1948
        %v1950 = vmul.f32 %v1949, %v1930
        %v1951 = vmul.f32 %v1949, %v1933
        %v1952 = vadd.f32 %v1878, %v1950
        %v1953 = vadd.f32 %v1879, %v1951
        %s1954 = sld [smem:[#allocation4 + $0x183]]
        %v1955 = vstv %s1954
        %v1956 = vmul.f32 %v1955, %v1930
        %v1957 = vmul.f32 %v1955, %v1933
        %v1958 = vadd.f32 %v1884, %v1956
        %v1959 = vadd.f32 %v1885, %v1957
        %1960 = vst [vmem:[%s382] sm:$0xff] %v1940
        %1961 = vst [vmem:[%s382 + $0x8] sm:$0xff] %v1941
        %s1962 = scalar_lea.vmem %s382, 16 [#allocation9]
        %1963 = vst [vmem:[%s1962] sm:$0xff] %v1946
        %1964 = vst [vmem:[%s1962 + $0x8] sm:$0xff] %v1947
        %s1965 = scalar_lea.vmem %s382, 32 [#allocation9]
        %1966 = vst [vmem:[%s1965] sm:$0xff] %v1952
        %1967 = vst [vmem:[%s1965 + $0x8] sm:$0xff] %v1953
        %s1968 = scalar_lea.vmem %s382, 48 [#allocation9]
        %1969 = vst [vmem:[%s1968] sm:$0xff] %v1958
        %1970 = vst [vmem:[%s1968 + $0x8] sm:$0xff] %v1959
        %s1971 = sand.u32 %s237, 1
        %s1972 = scalar_lea.sflag [#allocation5], %s1971
        %s1973 = sand.u32 %s237, 1
        %s1974 = smul.addr %s1973, 64
        %s1975 = scalar_lea.vmem [#allocation9], %s1974
        // Predicated region
        $region65: #{tpu_custom_call.1} parent=51 // pred_check
          %p1976 = pneg %p247
        $region66: #{tpu_custom_call.1} parent=51 // pred_check_branch
          %1978 = sbr.rel (%p1976) target = $region68
        $region67: #{tpu_custom_call.1} parent=51 // pred_region
          %s1979 = smul.u32 2, %s30
          %s1981 = ssub.s32 1024, 1024
          %1982 = vsyncadd %s1972, %s1981
          %s1983 = sadd.s32 %s31, %s1979
          %s1984 = smul.addr %s29, 8
          %s1985 = sadd.s32 %s1983, %s1984
          %s1986 = smul.addr %s1985, 128
          %s1987 = scalar_lea.hbm %s8, %s1986
          %s1988 = sshll.u32 %s1975, 4
          %s1989 = int_to_ptr.vmem [resolvable:$true] %s1988
          %1994 = dma.vmem_to_hbm [thread:$0]  %s1989, 1024, %s1987, %s1972, 128, 128, 8
        $region68: #{tpu_custom_call.1} parent=51 // pred_fallthru
          _
      $region52: #{tpu_custom_call.1} parent=5 // pred_fallthru
        _
      %p1995 = scmp.le.s32.totalorder 2, %s19
      // Predicated region
      $region69: #{tpu_custom_call.1} parent=5 // pred_check
        %p1996 = pneg %p1995
      $region70: #{tpu_custom_call.1} parent=5 // pred_check_branch
        %1998 = sbr.rel (%p1996) target = $region72
      $region71: #{tpu_custom_call.1} parent=5 // pred_region
        %s1999 = ssub.s32 %s19, 2
        // Predicated region
        $region73: #{tpu_custom_call.1} parent=71 // pred_check
          %p2000 = pneg %p253
        $region74: #{tpu_custom_call.1} parent=71 // pred_check_branch
          %2002 = sbr.rel (%p2000) target = $region76
        $region75: #{tpu_custom_call.1} parent=71 // pred_region
          %s2003 = sand.u32 %s238, 1
          %s2004 = scalar_lea.sflag [#allocation5], %s2003
          %s2005 = sand.u32 %s238, 1
          %s2006 = smul.addr %s2005, 64
          %s2007 = scalar_lea.vmem [#allocation9], %s2006
          %2008 = dma.done %s2004, 1024
        $region76: #{tpu_custom_call.1} parent=71 // pred_fallthru
          _
      $region72: #{tpu_custom_call.1} parent=5 // pred_fallthru
        _
    $region6: #{tpu_custom_call.1} parent=1 // loop_footer
      %s23 = sadd.s32 1, %s19
    $region7: #{tpu_custom_call.1} parent=1 // loop_footer_branch
      %18 = sbr.rel target = $region3
    $region8: #{tpu_custom_call.1} parent=1 // loop_exit
      _
    %2009 = vsyncpa [#allocation5], 1
    %s2010 = scalar_lea.sflag [#allocation5], 1
    %2011 = vsyncpa %s2010, 1
    %2012 = vsyncpa [#allocation6], 1
    %s2013 = scalar_lea.sflag [#allocation6], 1
    %2014 = vsyncpa %s2013, 1
    %2015 = vsyncpa [#allocation8], 1

</llo_original>
